<compile_context>
chip_gen: v7x
topology: tpu7x:2x2x1
jax: 0.10.0
libtpu: 0.0.40
codegen_flags: <defaults>
</compile_context>

<pallas_src>
import functools

import jax
import jax.numpy as jnp
from jax.experimental import pallas as pl
from jax.experimental.pallas import tpu as pltpu

CONV1_FILTERS, CONV1_K = 8, 9
CONV2_FILTERS, CONV2_K = 8, 1
CONV3_K = 5
_LANE = 128


# ---------------------------------------------------------------------------
# One-time weight re-packing (hoisted out of the per-call forward).
# ---------------------------------------------------------------------------
def _band_matrix(taps, in_w, out_w):
    """taps: (C, K) -> (C, in_w, out_w) banded Toeplitz slabs:
       band[c, i, ow] = taps[c, i - ow] if 0 <= i - ow < K else 0."""
    K = taps.shape[-1]
    i = jnp.arange(in_w)[:, None]
    ow = jnp.arange(out_w)[None, :]
    kx = i - ow
    valid = (kx >= 0) & (kx < K)
    vals = taps[:, jnp.clip(kx, 0, K - 1)]          # (C, in_w, out_w)
    return jnp.where(valid[None, :, :], vals, 0.0)


def pack_params(params, H, W):
    """Re-pack PyTorch Conv2d weights into MXU-friendly bf16 matrices.
    Call ONCE per parameter set / patch size and reuse the result."""
    del H
    (w1, b1), (w2, b2), (w3, b3) = params
    f32, bf16 = jnp.float32, jnp.bfloat16
    OW1 = W - CONV1_K + 1
    OW3 = OW1 - CONV3_K + 1
    OW3P = max(_LANE, -(-OW3 // _LANE) * _LANE)     # lane-dense conv3 columns
    C1, C2 = w1.shape[0], w2.shape[0]
    C1W = C1 * OW1

    # conv1: im2col-over-ky LHS (rows, 9*W) @ T1 (9*W, C1*OW1)
    t1 = jnp.concatenate(
        [jnp.transpose(_band_matrix(w1[:, 0, ky, :].astype(f32), W, OW1),
                       (1, 0, 2)).reshape(W, C1W)
         for ky in range(CONV1_K)], axis=0)                         # (9W, C1W)
    b1r = jnp.repeat(b1.astype(f32), OW1).reshape(1, C1W)

    # conv2 (1x1): block-diagonal channel mixer,
    # M2[c'*OW1+ow', c*OW1+ow] = w2[c, c'] * (ow == ow').
    m2 = jnp.kron(w2[:, :, 0, 0].astype(f32).T, jnp.eye(OW1, dtype=f32))
    b2r = jnp.repeat(b2.astype(f32), OW1).reshape(1, C2 * OW1)

    # conv3: per-ky banded blocks, each padded to OW3P lane-dense columns.
    t3 = jnp.stack(
        [jnp.pad(_band_matrix(w3[0, :, ky, :].astype(f32), OW1, OW3)
                 .reshape(C2 * OW1, OW3), ((0, 0), (0, OW3P - OW3)))
         for ky in range(CONV3_K)])                                 # (5, C1W, OW3P)
    b3s = b3.astype(f32).reshape(1)
    return (t1.astype(bf16), b1r, m2.astype(bf16), b2r, t3.astype(bf16), b3s)


# ---------------------------------------------------------------------------
# Fused kernel: one grid step = BLOCK_BATCH images, all three layers.
# ---------------------------------------------------------------------------
def _fused_kernel(x_ref, t1_ref, b1_ref, m2_ref, b2_ref, t3_ref, b3_ref,
                  o_ref, act2_scr, *, kh3):
    f32, bf16 = jnp.float32, jnp.bfloat16
    m = x_ref.shape[0]                       # = BLOCK_BATCH * OH1 folded rows

    # conv1 (9x9, 1->8) + ReLU: ky taps pre-concatenated in the wrapper
    # -> ONE (m, 9W) @ (9W, 192) MXU matmul, bf16 operands, f32 accumulation.
    act1 = jnp.dot(x_ref[...].astype(bf16), t1_ref[...],
                   preferred_element_type=f32) + b1_ref[...]
    act1 = jnp.maximum(act1, 0.0)

    # conv2 (1x1, 8->8) + ReLU: one block-diagonal (m, 192) @ (192, 192) dot.
    act2 = jnp.dot(act1.astype(bf16), m2_ref[...],
                   preferred_element_type=f32) + b2_ref[...]

    # Stage act2 in VMEM with zeroed guard rows so every conv3 row tap is a
    # plain shifted slice of the same buffer (no cross-image contamination for
    # valid output rows; guard rows only feed rows the wrapper slices away).
    act2_scr[0:m, :] = jnp.maximum(act2, 0.0)
    pad = act2_scr.shape[0] - m
    act2_scr[m:, :] = jnp.zeros((pad, act2_scr.shape[1]), f32)

    # conv3 (5x5, 8->1) + ReLU: kh3 full-M, K=192, N=128 (lane-dense) matmuls.
    acc = jnp.dot(act2_scr[0:m, :].astype(bf16), t3_ref[0],
                  preferred_element_type=f32)
    for ky in range(1, kh3):
        acc = acc + jnp.dot(act2_scr[ky:ky + m, :].astype(bf16), t3_ref[ky],
                            preferred_element_type=f32)
    o_ref[...] = jnp.maximum(acc + b3_ref[0], 0.0).astype(o_ref.dtype)


@functools.partial(jax.jit, static_argnames=("block_batch",))
def _forward_impl(x, t1, b1r, m2, b2r, t3, b3s, *, block_batch):
    N, Cin, H, W = x.shape
    assert Cin == 1
    OH1, OW1 = H - CONV1_K + 1, W - CONV1_K + 1
    OH3, OW3 = OH1 - CONV3_K + 1, OW1 - CONV3_K + 1
    C1W = CONV1_FILTERS * OW1
    KW = CONV1_K * W
    OW3P = t3.shape[-1]
    assert t1.shape == (KW, C1W), "packed weights do not match input size"

    bb = block_batch
    Np = -(-N // bb) * bb                         # pad batch to a multiple of bb
    G = Np // bb

    # im2col over ky (kept f32 so the (B,OH1,9W)->(B*OH1,9W) row fold stays
    # (8,128)-tile aligned; the kernel casts to bf16).
    x2 = x[:, 0, :, :]
    xcat = jnp.concatenate([x2[:, ky:ky + OH1, :] for ky in range(CONV1_K)],
                           axis=-1)                              # (N, OH1, 9W)
    if Np != N:
        xcat = jnp.pad(xcat, ((0, Np - N), (0, 0), (0, 0)))
    xcat = xcat.reshape(Np * OH1, KW)

    kernel = functools.partial(_fused_kernel, kh3=CONV3_K)
    out2d = pl.pallas_call(
        kernel,
        out_shape=jax.ShapeDtypeStruct((Np * OH1, OW3P), x.dtype),
        grid=(G,),
        in_specs=[
            pl.BlockSpec((bb * OH1, KW), lambda g: (g, 0)),          # x im2col
            pl.BlockSpec((KW, C1W), lambda g: (0, 0)),               # T1
            pl.BlockSpec((1, C1W), lambda g: (0, 0)),                # b1 row
            pl.BlockSpec((C1W, C1W), lambda g: (0, 0)),              # M2
            pl.BlockSpec((1, C1W), lambda g: (0, 0)),                # b2 row
            pl.BlockSpec((CONV3_K, C1W, OW3P), lambda g: (0, 0, 0)), # T3
            pl.BlockSpec(memory_space=pltpu.MemorySpace.SMEM),       # b3 scalar
        ],
        out_specs=pl.BlockSpec((bb * OH1, OW3P), lambda g: (g, 0)),
        scratch_shapes=[pltpu.VMEM((bb * OH1 + 8, C1W), jnp.float32)],
        compiler_params=pltpu.CompilerParams(
            dimension_semantics=("parallel",)),
    )(xcat, t1, b1r, m2, b2r, t3, b3s)

    out = out2d.reshape(Np, OH1, OW3P)[:N, :OH3, :OW3]
    return out[:, None, :, :]


def generator_forward(x, packed):
    """NCHW (N, 1, H, W) float -> (N, 1, H-12, W-12).
    `packed` must come from pack_params(params, H, W) (computed once)."""
    N = x.shape[0]
    OH1 = x.shape[2] - CONV1_K + 1
    # >= 2 grid steps when N >= 2 (v7x has 2 TCs), at most 16 images per step.
    bb = 1 if N <= 1 else max(1, min(16, N // 2))
    while (bb * OH1) % 8:                         # keep row blocks 8-aligned
        bb *= 2
    return _forward_impl(x, *packed, block_batch=bb)


# ---------------------------------------------------------------------------
# Params + pure-JAX reference for correctness checking.
# ---------------------------------------------------------------------------
def init_params(key):
    """Deterministic synthetic params with PyTorch Conv2d shapes."""
    ks = jax.random.split(key, 6)

    def w_init(k, shape):
        fan_in = shape[1] * shape[2] * shape[3]
        bound = 1.0 / jnp.sqrt(fan_in)
        return jax.random.uniform(k, shape, jnp.float32, -bound, bound)

    def b_init(k, cout, fan_in):
        bound = 1.0 / jnp.sqrt(fan_in)
        return jax.random.uniform(k, (cout,), jnp.float32, -bound, bound)

    w1 = w_init(ks[0], (CONV1_FILTERS, 1, CONV1_K, CONV1_K))
    b1 = b_init(ks[1], CONV1_FILTERS, 1 * CONV1_K * CONV1_K)
    w2 = w_init(ks[2], (CONV2_FILTERS, CONV1_FILTERS, CONV2_K, CONV2_K))
    b2 = b_init(ks[3], CONV2_FILTERS, CONV1_FILTERS * CONV2_K * CONV2_K)
    w3 = w_init(ks[4], (1, CONV2_FILTERS, CONV3_K, CONV3_K))
    b3 = b_init(ks[5], 1, CONV2_FILTERS * CONV3_K * CONV3_K)
    return (w1, b1), (w2, b2), (w3, b3)


def _reference_forward(x, params):
    out = x
    for (w, b) in params:
        out = jax.lax.conv_general_dilated(
            out, w, window_strides=(1, 1), padding="VALID",
            dimension_numbers=("NCHW", "OIHW", "NCHW"),
            precision=jax.lax.Precision.HIGHEST)
        out = jax.nn.relu(out + b[None, :, None, None])
    return out


if __name__ == "__main__":
    key = jax.random.PRNGKey(0)
    kx, kp = jax.random.split(key)

    # HiCPlus-style input: batch=2, 1 channel, 32x32 contact-map patch.
    x = jax.random.uniform(kx, (2, 1, 32, 32), jnp.float32)
    params = init_params(kp)

    packed = pack_params(params, 32, 32)          # one-time packing (hoisted)
    out = jax.block_until_ready(generator_forward(x, packed))
    ref = jax.block_until_ready(_reference_forward(x, params))

    assert out.shape == (2, 1, 20, 20), out.shape
    # bf16 MXU operands with f32 accumulation: expect ~1e-3 typical error.
    err = float(jnp.max(jnp.abs(out - ref)))
    assert err < 2e-2, err

    print("KERNEL_OK")
</pallas_src>

<mosaic_0001>
module attributes {stable_mosaic.version = 11 : i64} {
  func.func @_fused_kernel(%arg0: i32, %arg1: memref<24x288xf32, #tpu.memory_space<vmem>>, %arg2: memref<288x192xbf16, #tpu.memory_space<vmem>>, %arg3: memref<1x192xf32, #tpu.memory_space<vmem>>, %arg4: memref<192x192xbf16, #tpu.memory_space<vmem>>, %arg5: memref<1x192xf32, #tpu.memory_space<vmem>>, %arg6: memref<5x192x128xbf16, #tpu.memory_space<vmem>>, %arg7: memref<1xf32, #tpu.memory_space<smem>>, %arg8: memref<24x128xf32, #tpu.memory_space<vmem>>, %arg9: memref<32x192xf32, #tpu.memory_space<vmem>>) attributes {dimension_semantics = [#tpu.dimension_semantics<parallel>], iteration_bounds = array<i64: 2>, scalar_prefetch = 0 : i64, scratch_operands = 1 : i64, tpu.core_type = #tpu.core_type<tc>, window_params = [{transform_indices = @transform_0, window_bounds = array<i64: 24, 288>}, {pipeline_mode = #tpu.pipeline_mode<synchronous>, transform_indices = @transform_1, window_bounds = array<i64: 288, 192>}, {pipeline_mode = #tpu.pipeline_mode<synchronous>, transform_indices = @transform_2, window_bounds = array<i64: 1, 192>}, {pipeline_mode = #tpu.pipeline_mode<synchronous>, transform_indices = @transform_3, window_bounds = array<i64: 192, 192>}, {pipeline_mode = #tpu.pipeline_mode<synchronous>, transform_indices = @transform_4, window_bounds = array<i64: 1, 192>}, {pipeline_mode = #tpu.pipeline_mode<synchronous>, transform_indices = @transform_5, window_bounds = array<i64: 5, 192, 128>}, {transform_indices = @transform_6, window_bounds = array<i64: 1>}, {transform_indices = @transform_7, window_bounds = array<i64: 24, 128>}]} {
    %c0 = arith.constant 0 : index
    %c0_0 = arith.constant 0 : index
    %0 = vector.load %arg1[%c0, %c0_0] : memref<24x288xf32, #tpu.memory_space<vmem>>, vector<24x288xf32>
    %1 = arith.truncf %0 : vector<24x288xf32> to vector<24x288xbf16>
    %c0_1 = arith.constant 0 : index
    %c0_2 = arith.constant 0 : index
    %2 = vector.load %arg2[%c0_1, %c0_2] : memref<288x192xbf16, #tpu.memory_space<vmem>>, vector<288x192xbf16>
    %cst = arith.constant dense<0.000000e+00> : vector<24x192xf32>
    %3 = tpu.matmul %1, %2, %cst {dimension_numbers = #tpu.dot_dimension_numbers<[1], [0], [0], [1], [0, 0, 1, 1], [], []>} : vector<24x288xbf16>, vector<288x192xbf16>, vector<24x192xf32> -> vector<24x192xf32>
    %c0_3 = arith.constant 0 : index
    %c0_4 = arith.constant 0 : index
    %4 = vector.load %arg3[%c0_3, %c0_4] : memref<1x192xf32, #tpu.memory_space<vmem>>, vector<1x192xf32>
    %5 = vector.broadcast %4 : vector<1x192xf32> to vector<24x192xf32>
    %6 = arith.addf %3, %5 : vector<24x192xf32>
    %cst_5 = arith.constant 0.000000e+00 : f32
    %7 = vector.broadcast %cst_5 : f32 to vector<24x192xf32>
    %8 = arith.maximumf %6, %7 : vector<24x192xf32>
    %9 = arith.truncf %8 : vector<24x192xf32> to vector<24x192xbf16>
    %c0_6 = arith.constant 0 : index
    %c0_7 = arith.constant 0 : index
    %10 = vector.load %arg4[%c0_6, %c0_7] : memref<192x192xbf16, #tpu.memory_space<vmem>>, vector<192x192xbf16>
    %cst_8 = arith.constant dense<0.000000e+00> : vector<24x192xf32>
    %11 = tpu.matmul %9, %10, %cst_8 {dimension_numbers = #tpu.dot_dimension_numbers<[1], [0], [0], [1], [0, 0, 1, 1], [], []>} : vector<24x192xbf16>, vector<192x192xbf16>, vector<24x192xf32> -> vector<24x192xf32>
    %c0_9 = arith.constant 0 : index
    %c0_10 = arith.constant 0 : index
    %12 = vector.load %arg5[%c0_9, %c0_10] : memref<1x192xf32, #tpu.memory_space<vmem>>, vector<1x192xf32>
    %13 = vector.broadcast %12 : vector<1x192xf32> to vector<24x192xf32>
    %14 = arith.addf %11, %13 : vector<24x192xf32>
    %cst_11 = arith.constant 0.000000e+00 : f32
    %15 = vector.broadcast %cst_11 : f32 to vector<24x192xf32>
    %16 = arith.maximumf %14, %15 : vector<24x192xf32>
    %c0_12 = arith.constant 0 : index
    %c0_13 = arith.constant 0 : index
    %17 = vector.load %arg9[%c0_12, %c0_13] : memref<32x192xf32, #tpu.memory_space<vmem>>, vector<24x192xf32>
    tpu.vector_store %arg9[%c0_12, %c0_13], %16 {strides = array<i32>} : memref<32x192xf32, #tpu.memory_space<vmem>>, vector<24x192xf32>,
    %cst_14 = arith.constant 0.000000e+00 : f32
    %18 = vector.broadcast %cst_14 : f32 to vector<8x192xf32>
    %c24 = arith.constant 24 : index
    %c0_15 = arith.constant 0 : index
    %19 = vector.load %arg9[%c24, %c0_15] : memref<32x192xf32, #tpu.memory_space<vmem>>, vector<8x192xf32>
    tpu.vector_store %arg9[%c24, %c0_15], %18 {strides = array<i32>} : memref<32x192xf32, #tpu.memory_space<vmem>>, vector<8x192xf32>,
    %c0_16 = arith.constant 0 : index
    %c0_17 = arith.constant 0 : index
    %20 = vector.load %arg9[%c0_16, %c0_17] : memref<32x192xf32, #tpu.memory_space<vmem>>, vector<24x192xf32>
    %21 = arith.truncf %20 : vector<24x192xf32> to vector<24x192xbf16>
    %c0_18 = arith.constant 0 : index
    %c0_19 = arith.constant 0 : index
    %c0_20 = arith.constant 0 : index
    %22 = vector.load %arg6[%c0_18, %c0_19, %c0_20] : memref<5x192x128xbf16, #tpu.memory_space<vmem>>, vector<1x192x128xbf16>
    %23 = vector.shape_cast %22 : vector<1x192x128xbf16> to vector<192x128xbf16>
    %cst_21 = arith.constant dense<0.000000e+00> : vector<24x128xf32>
    %24 = tpu.matmul %21, %23, %cst_21 {dimension_numbers = #tpu.dot_dimension_numbers<[1], [0], [0], [1], [0, 0, 1, 1], [], []>} : vector<24x192xbf16>, vector<192x128xbf16>, vector<24x128xf32> -> vector<24x128xf32>
    %c1 = arith.constant 1 : index
    %c0_22 = arith.constant 0 : index
    %25 = vector.load %arg9[%c1, %c0_22] : memref<32x192xf32, #tpu.memory_space<vmem>>, vector<24x192xf32>
    %26 = arith.truncf %25 : vector<24x192xf32> to vector<24x192xbf16>
    %c1_23 = arith.constant 1 : index
    %c0_24 = arith.constant 0 : index
    %c0_25 = arith.constant 0 : index
    %27 = vector.load %arg6[%c1_23, %c0_24, %c0_25] : memref<5x192x128xbf16, #tpu.memory_space<vmem>>, vector<1x192x128xbf16>
    %28 = vector.shape_cast %27 : vector<1x192x128xbf16> to vector<192x128xbf16>
    %cst_26 = arith.constant dense<0.000000e+00> : vector<24x128xf32>
    %29 = tpu.matmul %26, %28, %cst_26 {dimension_numbers = #tpu.dot_dimension_numbers<[1], [0], [0], [1], [0, 0, 1, 1], [], []>} : vector<24x192xbf16>, vector<192x128xbf16>, vector<24x128xf32> -> vector<24x128xf32>
    %30 = arith.addf %24, %29 : vector<24x128xf32>
    %c2 = arith.constant 2 : index
    %c0_27 = arith.constant 0 : index
    %31 = vector.load %arg9[%c2, %c0_27] : memref<32x192xf32, #tpu.memory_space<vmem>>, vector<24x192xf32>
    %32 = arith.truncf %31 : vector<24x192xf32> to vector<24x192xbf16>
    %c2_28 = arith.constant 2 : index
    %c0_29 = arith.constant 0 : index
    %c0_30 = arith.constant 0 : index
    %33 = vector.load %arg6[%c2_28, %c0_29, %c0_30] : memref<5x192x128xbf16, #tpu.memory_space<vmem>>, vector<1x192x128xbf16>
    %34 = vector.shape_cast %33 : vector<1x192x128xbf16> to vector<192x128xbf16>
    %cst_31 = arith.constant dense<0.000000e+00> : vector<24x128xf32>
    %35 = tpu.matmul %32, %34, %cst_31 {dimension_numbers = #tpu.dot_dimension_numbers<[1], [0], [0], [1], [0, 0, 1, 1], [], []>} : vector<24x192xbf16>, vector<192x128xbf16>, vector<24x128xf32> -> vector<24x128xf32>
    %36 = arith.addf %30, %35 : vector<24x128xf32>
    %c3 = arith.constant 3 : index
    %c0_32 = arith.constant 0 : index
    %37 = vector.load %arg9[%c3, %c0_32] : memref<32x192xf32, #tpu.memory_space<vmem>>, vector<24x192xf32>
    %38 = arith.truncf %37 : vector<24x192xf32> to vector<24x192xbf16>
    %c3_33 = arith.constant 3 : index
    %c0_34 = arith.constant 0 : index
    %c0_35 = arith.constant 0 : index
    %39 = vector.load %arg6[%c3_33, %c0_34, %c0_35] : memref<5x192x128xbf16, #tpu.memory_space<vmem>>, vector<1x192x128xbf16>
    %40 = vector.shape_cast %39 : vector<1x192x128xbf16> to vector<192x128xbf16>
    %cst_36 = arith.constant dense<0.000000e+00> : vector<24x128xf32>
    %41 = tpu.matmul %38, %40, %cst_36 {dimension_numbers = #tpu.dot_dimension_numbers<[1], [0], [0], [1], [0, 0, 1, 1], [], []>} : vector<24x192xbf16>, vector<192x128xbf16>, vector<24x128xf32> -> vector<24x128xf32>
    %42 = arith.addf %36, %41 : vector<24x128xf32>
    %c4 = arith.constant 4 : index
    %c0_37 = arith.constant 0 : index
    %43 = vector.load %arg9[%c4, %c0_37] : memref<32x192xf32, #tpu.memory_space<vmem>>, vector<24x192xf32>
    %44 = arith.truncf %43 : vector<24x192xf32> to vector<24x192xbf16>
    %c4_38 = arith.constant 4 : index
    %c0_39 = arith.constant 0 : index
    %c0_40 = arith.constant 0 : index
    %45 = vector.load %arg6[%c4_38, %c0_39, %c0_40] : memref<5x192x128xbf16, #tpu.memory_space<vmem>>, vector<1x192x128xbf16>
    %46 = vector.shape_cast %45 : vector<1x192x128xbf16> to vector<192x128xbf16>
    %cst_41 = arith.constant dense<0.000000e+00> : vector<24x128xf32>
    %47 = tpu.matmul %44, %46, %cst_41 {dimension_numbers = #tpu.dot_dimension_numbers<[1], [0], [0], [1], [0, 0, 1, 1], [], []>} : vector<24x192xbf16>, vector<192x128xbf16>, vector<24x128xf32> -> vector<24x128xf32>
    %48 = arith.addf %42, %47 : vector<24x128xf32>
    %c0_42 = arith.constant 0 : index
    %49 = memref.load %arg7[%c0_42] : memref<1xf32, #tpu.memory_space<smem>>
    %50 = vector.broadcast %49 : f32 to vector<24x128xf32>
    %51 = arith.addf %48, %50 : vector<24x128xf32>
    %cst_43 = arith.constant 0.000000e+00 : f32
    %52 = vector.broadcast %cst_43 : f32 to vector<24x128xf32>
    %53 = arith.maximumf %51, %52 : vector<24x128xf32>
    %c0_44 = arith.constant 0 : index
    %c0_45 = arith.constant 0 : index
    %54 = vector.load %arg8[%c0_44, %c0_45] : memref<24x128xf32, #tpu.memory_space<vmem>>, vector<24x128xf32>
    tpu.vector_store %arg8[%c0_44, %c0_45], %53 {strides = array<i32>} : memref<24x128xf32, #tpu.memory_space<vmem>>, vector<24x128xf32>,
    return
  }
  func.func @transform_0(%arg0: i32) -> (i32, i32) {
    %c0_i32 = arith.constant 0 : i32
    %c0_i32_0 = arith.constant 0 : i32
    return %arg0, %c0_i32 : i32, i32
  }
  func.func @transform_1(%arg0: i32) -> (i32, i32) {
    %c0_i32 = arith.constant 0 : i32
    %c0_i32_0 = arith.constant 0 : i32
    %c0_i32_1 = arith.constant 0 : i32
    return %c0_i32, %c0_i32_0 : i32, i32
  }
  func.func @transform_2(%arg0: i32) -> (i32, i32) {
    %c0_i32 = arith.constant 0 : i32
    %c0_i32_0 = arith.constant 0 : i32
    %c0_i32_1 = arith.constant 0 : i32
    return %c0_i32, %c0_i32_0 : i32, i32
  }
  func.func @transform_3(%arg0: i32) -> (i32, i32) {
    %c0_i32 = arith.constant 0 : i32
    %c0_i32_0 = arith.constant 0 : i32
    %c0_i32_1 = arith.constant 0 : i32
    return %c0_i32, %c0_i32_0 : i32, i32
  }
  func.func @transform_4(%arg0: i32) -> (i32, i32) {
    %c0_i32 = arith.constant 0 : i32
    %c0_i32_0 = arith.constant 0 : i32
    %c0_i32_1 = arith.constant 0 : i32
    return %c0_i32, %c0_i32_0 : i32, i32
  }
  func.func @transform_5(%arg0: i32) -> (i32, i32, i32) {
    %c0_i32 = arith.constant 0 : i32
    %c0_i32_0 = arith.constant 0 : i32
    %c0_i32_1 = arith.constant 0 : i32
    %c0_i32_2 = arith.constant 0 : i32
    return %c0_i32, %c0_i32_0, %c0_i32_1 : i32, i32, i32
  }
  func.func @transform_6(%arg0: i32) -> i32 {
    %c0_i32 = arith.constant 0 : i32
    %c0_i32_0 = arith.constant 0 : i32
    return %c0_i32 : i32
  }
  func.func @transform_7(%arg0: i32) -> (i32, i32) {
    %c0_i32 = arith.constant 0 : i32
    %c0_i32_0 = arith.constant 0 : i32
    return %arg0, %c0_i32 : i32, i32
  }
}

</mosaic_0001>

<llo_original>
// kernel: _forward_impl.1
$region0: #{_forward_impl.1}
  #allocation0 [shape = 'u32[]', space=smem, size = 0x4, offset = 0x4, fixed_abs, tag = 'smem constant byte address 0x4 - core index']
  #allocation1 [shape = 'u32[144,128]{1,0:T(1,128)}', space=vmem, size = 0x12000, scoped, tag = 'internal scratch']
  #allocation2 [shape = 'f32[32,192]{1,0:T(8,128)}', space=vmem, size = 0x8000, scoped, tag = 'scratch operand']
  #allocation3 [shape = 'f32[1]{0:T(128)S(6)}', space=smem, size = 0x200, scoped, tag = 'scoped memory for _forward_impl.1']
  %s0 = inlined_call_operand.vmem [shape: f32[48,288], index: 0, kind: input, shape index: {}]
  %s1 = inlined_call_operand.vmem [shape: bf16[288,192], index: 1, kind: input, shape index: {}]
  %s2 = inlined_call_operand.vmem [shape: f32[1,192], index: 2, kind: input, shape index: {}]
  %s3 = inlined_call_operand.vmem [shape: bf16[192,192], index: 3, kind: input, shape index: {}]
  %s4 = inlined_call_operand.vmem [shape: f32[1,192], index: 4, kind: input, shape index: {}]
  %s5 = inlined_call_operand.vmem [shape: bf16[5,192,128], index: 5, kind: input, shape index: {}]
  %s6 = inlined_call_operand.<no memory space> [shape: f32[1], index: 6, kind: input, shape index: {}]
  %s7 = inlined_call_operand.vmem [shape: f32[48,128], index: 7, kind: output, shape index: {}]
  %s8 = sld [smem:[#allocation0]]
  $region61: #{_forward_impl.1} parent=0
    _
  %s10 = ssub.s32 1, %s8
  %s11 = scalar_select 0, %s10, %s8
  %12 = sst [smem:[#allocation3]] %s6
  loop: start=0, step=1, limit=4
  $region2: #{_forward_impl.1} parent=0 // loop_pre_header
    _
  $region3: #{_forward_impl.1} parent=0 // loop_header
    %s14 = sphi 0, %s18
    %p15 = scmp.ge.s32.totalorder %s14, 4
    %s24 = sphi 0, %s26
    %s27 = sphi 0, %s24
    %s28 = sphi 0, %s27
    %s44 = sphi 0, %s28
    %s48 = sphi 0, %s48
    %s50 = sphi 0, %s48
    %s51 = sphi 0, %s50
    %s65 = sphi 0, %s51
    %s69 = sphi 0, %s69
    %s71 = sphi 0, %s69
    %s72 = sphi 0, %s71
    %s86 = sphi 0, %s72
    %s90 = sphi 0, %s90
    %s92 = sphi 0, %s90
    %s93 = sphi 0, %s92
    %s107 = sphi 0, %s93
    %s111 = sphi 0, %s111
    %s113 = sphi 0, %s111
    %s114 = sphi 0, %s113
    %s128 = sphi 0, %s114
    %s132 = sphi 0, %s132
    %s134 = sphi 0, %s132
    %s135 = sphi 0, %s134
    %s149 = sphi 0, %s135
    %s153 = sphi 0, %s153
    %s155 = sphi 0, %s153
    %s156 = sphi 0, %s155
    %s170 = sphi 0, %s156
    %s176 = sphi 0, %s178
    %s179 = sphi 0, %s176
    %s180 = sphi 0, %s179
    %s196 = sphi 0, %s180
  $region4: #{_forward_impl.1} parent=0 // loop_header_branch
    %17 = sbr.rel (%p15) target = $region8
  $region5: #{_forward_impl.1} parent=0 // loop_body
    %s19 = ssub.s32 %s14, 1
    %s20 = ssub.s32 %s14, 2
    %s21 = sadd.s32 %s14, 1
    %s22 = ssub.s32 %s14, %s21
    %p23 = scmp.eq.s32.totalorder %s22, 0
    %s25 = sadd.s32 %s24, 1
    %s26 = scalar_select %p23, %s24, %s25
    %p29 = pneg %p23
    %p30 = scmp.eq.s32.totalorder %s14, 1
    %p31 = por %p29, %p30
    %p32 = scmp.ne.s32.totalorder %s24, %s27
    %p33 = scmp.eq.s32.totalorder %s14, 0
    %p34 = por %p32, %p33
    %p35 = scmp.ne.s32.totalorder %s24, %s27
    %p36 = scmp.eq.s32.totalorder %s19, 1
    %p37 = por %p35, %p36
    %p38 = scmp.ne.s32.totalorder %s27, %s28
    %p39 = scmp.eq.s32.totalorder %s19, 0
    %p40 = por %p38, %p39
    %p41 = scmp.ne.s32.totalorder %s27, %s28
    %p42 = scmp.eq.s32.totalorder %s20, 1
    %p43 = por %p41, %p42
    %p45 = scmp.ne.s32.totalorder %s28, %s44
    %p46 = scmp.eq.s32.totalorder %s20, 0
    %p47 = por %p45, %p46
    %s49 = sadd.s32 %s48, 1
    %p52 = scmp.eq.s32.totalorder %s14, 1
    %p53 = scmp.ne.s32.totalorder %s48, %s50
    %p54 = scmp.eq.s32.totalorder %s14, 0
    %p55 = por %p53, %p54
    %p56 = scmp.ne.s32.totalorder %s48, %s50
    %p57 = scmp.eq.s32.totalorder %s19, 1
    %p58 = por %p56, %p57
    %p59 = scmp.ne.s32.totalorder %s50, %s51
    %p60 = scmp.eq.s32.totalorder %s19, 0
    %p61 = por %p59, %p60
    %p62 = scmp.ne.s32.totalorder %s50, %s51
    %p63 = scmp.eq.s32.totalorder %s20, 1
    %p64 = por %p62, %p63
    %p66 = scmp.ne.s32.totalorder %s51, %s65
    %p67 = scmp.eq.s32.totalorder %s20, 0
    %p68 = por %p66, %p67
    %s70 = sadd.s32 %s69, 1
    %p73 = scmp.eq.s32.totalorder %s14, 1
    %p74 = scmp.ne.s32.totalorder %s69, %s71
    %p75 = scmp.eq.s32.totalorder %s14, 0
    %p76 = por %p74, %p75
    %p77 = scmp.ne.s32.totalorder %s69, %s71
    %p78 = scmp.eq.s32.totalorder %s19, 1
    %p79 = por %p77, %p78
    %p80 = scmp.ne.s32.totalorder %s71, %s72
    %p81 = scmp.eq.s32.totalorder %s19, 0
    %p82 = por %p80, %p81
    %p83 = scmp.ne.s32.totalorder %s71, %s72
    %p84 = scmp.eq.s32.totalorder %s20, 1
    %p85 = por %p83, %p84
    %p87 = scmp.ne.s32.totalorder %s72, %s86
    %p88 = scmp.eq.s32.totalorder %s20, 0
    %p89 = por %p87, %p88
    %s91 = sadd.s32 %s90, 1
    %p94 = scmp.eq.s32.totalorder %s14, 1
    %p95 = scmp.ne.s32.totalorder %s90, %s92
    %p96 = scmp.eq.s32.totalorder %s14, 0
    %p97 = por %p95, %p96
    %p98 = scmp.ne.s32.totalorder %s90, %s92
    %p99 = scmp.eq.s32.totalorder %s19, 1
    %p100 = por %p98, %p99
    %p101 = scmp.ne.s32.totalorder %s92, %s93
    %p102 = scmp.eq.s32.totalorder %s19, 0
    %p103 = por %p101, %p102
    %p104 = scmp.ne.s32.totalorder %s92, %s93
    %p105 = scmp.eq.s32.totalorder %s20, 1
    %p106 = por %p104, %p105
    %p108 = scmp.ne.s32.totalorder %s93, %s107
    %p109 = scmp.eq.s32.totalorder %s20, 0
    %p110 = por %p108, %p109
    %s112 = sadd.s32 %s111, 1
    %p115 = scmp.eq.s32.totalorder %s14, 1
    %p116 = scmp.ne.s32.totalorder %s111, %s113
    %p117 = scmp.eq.s32.totalorder %s14, 0
    %p118 = por %p116, %p117
    %p119 = scmp.ne.s32.totalorder %s111, %s113
    %p120 = scmp.eq.s32.totalorder %s19, 1
    %p121 = por %p119, %p120
    %p122 = scmp.ne.s32.totalorder %s113, %s114
    %p123 = scmp.eq.s32.totalorder %s19, 0
    %p124 = por %p122, %p123
    %p125 = scmp.ne.s32.totalorder %s113, %s114
    %p126 = scmp.eq.s32.totalorder %s20, 1
    %p127 = por %p125, %p126
    %p129 = scmp.ne.s32.totalorder %s114, %s128
    %p130 = scmp.eq.s32.totalorder %s20, 0
    %p131 = por %p129, %p130
    %s133 = sadd.s32 %s132, 1
    %p136 = scmp.eq.s32.totalorder %s14, 1
    %p137 = scmp.ne.s32.totalorder %s132, %s134
    %p138 = scmp.eq.s32.totalorder %s14, 0
    %p139 = por %p137, %p138
    %p140 = scmp.ne.s32.totalorder %s132, %s134
    %p141 = scmp.eq.s32.totalorder %s19, 1
    %p142 = por %p140, %p141
    %p143 = scmp.ne.s32.totalorder %s134, %s135
    %p144 = scmp.eq.s32.totalorder %s19, 0
    %p145 = por %p143, %p144
    %p146 = scmp.ne.s32.totalorder %s134, %s135
    %p147 = scmp.eq.s32.totalorder %s20, 1
    %p148 = por %p146, %p147
    %p150 = scmp.ne.s32.totalorder %s135, %s149
    %p151 = scmp.eq.s32.totalorder %s20, 0
    %p152 = por %p150, %p151
    %s154 = sadd.s32 %s153, 1
    %p157 = scmp.eq.s32.totalorder %s14, 1
    %p158 = scmp.ne.s32.totalorder %s153, %s155
    %p159 = scmp.eq.s32.totalorder %s14, 0
    %p160 = por %p158, %p159
    %p161 = scmp.ne.s32.totalorder %s153, %s155
    %p162 = scmp.eq.s32.totalorder %s19, 1
    %p163 = por %p161, %p162
    %p164 = scmp.ne.s32.totalorder %s155, %s156
    %p165 = scmp.eq.s32.totalorder %s19, 0
    %p166 = por %p164, %p165
    %p167 = scmp.ne.s32.totalorder %s155, %s156
    %p168 = scmp.eq.s32.totalorder %s20, 1
    %p169 = por %p167, %p168
    %p171 = scmp.ne.s32.totalorder %s156, %s170
    %p172 = scmp.eq.s32.totalorder %s20, 0
    %p173 = por %p171, %p172
    %s174 = ssub.s32 %s14, %s21
    %p175 = scmp.eq.s32.totalorder %s174, 0
    %s177 = sadd.s32 %s176, 1
    %s178 = scalar_select %p175, %s176, %s177
    %p181 = pneg %p175
    %p182 = scmp.eq.s32.totalorder %s14, 1
    %p183 = por %p181, %p182
    %p184 = scmp.ne.s32.totalorder %s176, %s179
    %p185 = scmp.eq.s32.totalorder %s14, 0
    %p186 = por %p184, %p185
    %p187 = scmp.ne.s32.totalorder %s176, %s179
    %p188 = scmp.eq.s32.totalorder %s19, 1
    %p189 = por %p187, %p188
    %p190 = scmp.ne.s32.totalorder %s179, %s180
    %p191 = scmp.eq.s32.totalorder %s19, 0
    %p192 = por %p190, %p191
    %p193 = scmp.ne.s32.totalorder %s179, %s180
    %p194 = scmp.eq.s32.totalorder %s20, 1
    %p195 = por %p193, %p194
    %p197 = scmp.ne.s32.totalorder %s180, %s196
    %p198 = scmp.eq.s32.totalorder %s20, 0
    %p199 = por %p197, %p198
    %p200 = scmp.le.s32.totalorder 1, %s14
    %p201 = scmp.lt.s32.totalorder %s14, 3
    %p202 = pnand %p200, %p201
    %p203 = pneg %p202
    // Predicated region
    $region9: #{_forward_impl.1} parent=5 // pred_check
      _
    $region10: #{_forward_impl.1} parent=5 // pred_check_branch
      %205 = sbr.rel (%p202) target = $region12
    $region11: #{_forward_impl.1} parent=5 // pred_region
      %s206 = ssub.s32 %s14, 1
      // Predicated region
      $region13: #{_forward_impl.1} parent=11 // pred_check
        %p207 = pneg %p61
      $region14: #{_forward_impl.1} parent=11 // pred_check_branch
        %209 = sbr.rel (%p207) target = $region16
      $region15: #{_forward_impl.1} parent=11 // pred_region
        _
      $region16: #{_forward_impl.1} parent=11 // pred_fallthru
        _
      // Predicated region
      $region17: #{_forward_impl.1} parent=11 // pred_check
        %p210 = pneg %p82
      $region18: #{_forward_impl.1} parent=11 // pred_check_branch
        %212 = sbr.rel (%p210) target = $region20
      $region19: #{_forward_impl.1} parent=11 // pred_region
        _
      $region20: #{_forward_impl.1} parent=11 // pred_fallthru
        _
      // Predicated region
      $region21: #{_forward_impl.1} parent=11 // pred_check
        %p213 = pneg %p103
      $region22: #{_forward_impl.1} parent=11 // pred_check_branch
        %215 = sbr.rel (%p213) target = $region24
      $region23: #{_forward_impl.1} parent=11 // pred_region
        _
      $region24: #{_forward_impl.1} parent=11 // pred_fallthru
        _
      // Predicated region
      $region25: #{_forward_impl.1} parent=11 // pred_check
        %p216 = pneg %p124
      $region26: #{_forward_impl.1} parent=11 // pred_check_branch
        %218 = sbr.rel (%p216) target = $region28
      $region27: #{_forward_impl.1} parent=11 // pred_region
        _
      $region28: #{_forward_impl.1} parent=11 // pred_fallthru
        _
      // Predicated region
      $region29: #{_forward_impl.1} parent=11 // pred_check
        %p219 = pneg %p145
      $region30: #{_forward_impl.1} parent=11 // pred_check_branch
        %221 = sbr.rel (%p219) target = $region32
      $region31: #{_forward_impl.1} parent=11 // pred_region
        _
      $region32: #{_forward_impl.1} parent=11 // pred_fallthru
        _
      // Predicated region
      $region33: #{_forward_impl.1} parent=11 // pred_check
        %p222 = pneg %p166
      $region34: #{_forward_impl.1} parent=11 // pred_check_branch
        %224 = sbr.rel (%p222) target = $region36
      $region35: #{_forward_impl.1} parent=11 // pred_region
        _
      $region36: #{_forward_impl.1} parent=11 // pred_fallthru
        _
    $region12: #{_forward_impl.1} parent=5 // pred_fallthru
      _
    %p225 = scmp.lt.s32.totalorder %s14, 2
    // Predicated region
    $region37: #{_forward_impl.1} parent=5 // pred_check
      %p226 = pneg %p225
    $region38: #{_forward_impl.1} parent=5 // pred_check_branch
      %228 = sbr.rel (%p226) target = $region40
    $region39: #{_forward_impl.1} parent=5 // pred_region
      // Predicated region
      $region41: #{_forward_impl.1} parent=39 // pred_check
        %p229 = pneg %p34
      $region42: #{_forward_impl.1} parent=39 // pred_check_branch
        %231 = sbr.rel (%p229) target = $region44
      $region43: #{_forward_impl.1} parent=39 // pred_region
        %s232 = smul.u32 3, %s14
        %p233 = scmp.lt.s32.totalorder %s232, 5
        %s234 = scalar_select %p233, %s232, 5
        %s235 = smul.addr %s234, 3
        %s236 = smul.addr %s235, 8
        %s237 = scalar_lea.vmem %s0, %s236
        %s238 = smul.u32 3, %s14
      $region44: #{_forward_impl.1} parent=39 // pred_fallthru
        _
    $region40: #{_forward_impl.1} parent=5 // pred_fallthru
      _
    %p239 = scmp.le.s32.totalorder 1, %s14
    %p240 = scmp.lt.s32.totalorder %s14, 3
    %p241 = pnand %p239, %p240
    %p242 = pneg %p241
    // Predicated region
    $region45: #{_forward_impl.1} parent=5 // pred_check
      _
    $region46: #{_forward_impl.1} parent=5 // pred_check_branch
      %244 = sbr.rel (%p241) target = $region48
    $region47: #{_forward_impl.1} parent=5 // pred_region
      %s245 = ssub.s32 %s14, 1
      %s246 = smul.u32 3, %s19
      %p247 = scmp.lt.s32.totalorder %s246, 5
      %s248 = scalar_select %p247, %s246, 5
      %s249 = smul.addr %s248, 3
      %s250 = smul.addr %s249, 8
      %s251 = scalar_lea.vmem %s0, %s250
      %p252 = pneg %p40
      %p253 = pneg %p37
      %p254 = pneg %p61
      %p255 = pneg %p58
      %p256 = pneg %p82
      %p257 = pneg %p79
      %p258 = pneg %p103
      %p259 = pneg %p100
      %p260 = pneg %p124
      %p261 = pneg %p121
      %p262 = pneg %p145
      %p263 = pneg %p142
      %p264 = pneg %p166
      %p265 = pneg %p163
      %p266 = pneg %p192
      %p267 = pneg %p189
      %s268 = smul.u32 3, %s19
      %p269 = scmp.lt.s32.totalorder %s268, 5
      %s270 = scalar_select %p269, %s268, 5
      %s271 = smul.addr %s270, 8
      %s272 = scalar_lea.vmem %s7, %s271
      %s273 = smul.u32 3, %s19
      %p274 = scmp.lt.s32.totalorder %s273, 5
      %s275 = scalar_select %p274, %s273, 5
      %s276 = smul.addr %s275, 3
      %s277 = smul.addr %s276, 8
      %s278 = scalar_lea.vmem %s0, %s277
      %s279 = smul.u32 3, %s19
      %s280 = smul.u32 3, %s19
      %p281 = scmp.lt.s32.totalorder %s280, 5
      %s282 = scalar_select %p281, %s280, 5
      %s283 = smul.addr %s282, 8
      %s284 = scalar_lea.vmem %s7, %s283
      %s285 = smul.u32 3, %s19
      %v287 = vld [vmem:[%s278] sm:$0xff]
      %v288 = vld [vmem:[%s278 + $0x8] sm:$0xff]
      %v289 = vld [vmem:[%s278 + $0x10] sm:$0xff]
      %v290 = vld [vmem:[%s278 + $0x18] sm:$0xff]
      %v291 = vld [vmem:[%s278 + $0x20] sm:$0xff]
      %v292 = vld [vmem:[%s278 + $0x28] sm:$0xff]
      %v293 = vld [vmem:[%s278 + $0x30] sm:$0xff]
      %v294 = vld [vmem:[%s278 + $0x38] sm:$0xff]
      %v295 = vld [vmem:[%s278 + $0x40] sm:$0xff]
      %v296 = vpack.c.bf16 %v290, %v287
      %v297 = vpack.c.bf16 %v291, %v288
      %v298 = vpack.c.bf16 %v292, %v289
      %v299 = vpack.c.bf16 %v293, %v293
      %v300 = vpack.c.bf16 %v294, %v294
      %v301 = vpack.c.bf16 %v295, %v295
      %v302 = vld [vmem:[%s1] sm:$0xff]
      %v303 = vld [vmem:[%s1 + $0x8] sm:$0xff]
      %v304 = vld [vmem:[%s1 + $0x10] sm:$0xff]
      %v305 = vld [vmem:[%s1 + $0x18] sm:$0xff]
      %v306 = vld [vmem:[%s1 + $0x20] sm:$0xff]
      %v307 = vld [vmem:[%s1 + $0x28] sm:$0xff]
      %v308 = vld [vmem:[%s1 + $0x30] sm:$0xff]
      %v309 = vld [vmem:[%s1 + $0x38] sm:$0xff]
      %v310 = vld [vmem:[%s1 + $0x40] sm:$0xff]
      %v311 = vld [vmem:[%s1 + $0x48] sm:$0xff]
      %v312 = vld [vmem:[%s1 + $0x50] sm:$0xff]
      %v313 = vld [vmem:[%s1 + $0x58] sm:$0xff]
      %v314 = vld [vmem:[%s1 + $0x60] sm:$0xff]
      %v315 = vld [vmem:[%s1 + $0x68] sm:$0xff]
      %v316 = vld [vmem:[%s1 + $0x70] sm:$0xff]
      %v317 = vld [vmem:[%s1 + $0x78] sm:$0xff]
      %v318 = vld [vmem:[%s1 + $0x80] sm:$0xff]
      %v319 = vld [vmem:[%s1 + $0x88] sm:$0xff]
      %v320 = vld [vmem:[%s1 + $0x90] sm:$0xff]
      %v321 = vld [vmem:[%s1 + $0x98] sm:$0xff]
      %v322 = vld [vmem:[%s1 + $0xa0] sm:$0xff]
      %v323 = vld [vmem:[%s1 + $0xa8] sm:$0xff]
      %v324 = vld [vmem:[%s1 + $0xb0] sm:$0xff]
      %v325 = vld [vmem:[%s1 + $0xb8] sm:$0xff]
      %v326 = vld [vmem:[%s1 + $0xc0] sm:$0xff]
      %v327 = vld [vmem:[%s1 + $0xc8] sm:$0xff]
      %v328 = vld [vmem:[%s1 + $0xd0] sm:$0xff]
      %v329 = vld [vmem:[%s1 + $0xd8] sm:$0xff]
      %v330 = vld [vmem:[%s1 + $0xe0] sm:$0xff]
      %v331 = vld [vmem:[%s1 + $0xe8] sm:$0xff]
      %v332 = vld [vmem:[%s1 + $0xf0] sm:$0xff]
      %v333 = vld [vmem:[%s1 + $0xf8] sm:$0xff]
      %v334 = vld [vmem:[%s1 + $0x100] sm:$0xff]
      %v335 = vld [vmem:[%s1 + $0x108] sm:$0xff]
      %v336 = vld [vmem:[%s1 + $0x110] sm:$0xff]
      %v337 = vld [vmem:[%s1 + $0x118] sm:$0xff]
      %v338 = vld [vmem:[%s2] sm:$0x3]
      %v340 = vlaneseq
      %v341 = vshrl.u32 %v340, 7
      %v342 = vsub.s32 0, %v341
      %v343 = vrot.slane %v338, %v342
      %v344 = vlaneseq
      %v345 = vshrl.u32 %v344, 7
      %v346 = vsub.s32 1, %v345
      %v347 = vrot.slane %v338, %v346
      %v386 = vunpack.c.l.b16 %v302
      %v387 = vunpack.c.h.b16 %v302
      %v388 = vunpack.c.l.b16 %v303
      %v389 = vunpack.c.h.b16 %v303
      %v390 = vunpack.c.l.b16 %v304
      %v391 = vunpack.c.h.b16 %v304
      %v392 = vunpack.c.l.b16 %v305
      %v393 = vunpack.c.h.b16 %v305
      %v394 = vunpack.c.l.b16 %v306
      %v395 = vunpack.c.h.b16 %v306
      %v396 = vunpack.c.l.b16 %v307
      %v397 = vunpack.c.h.b16 %v307
      %v398 = vunpack.c.l.b16 %v308
      %v399 = vunpack.c.h.b16 %v308
      %v400 = vunpack.c.l.b16 %v309
      %v401 = vunpack.c.h.b16 %v309
      %v402 = vunpack.c.l.b16 %v310
      %v403 = vunpack.c.h.b16 %v310
      %v404 = vunpack.c.l.b16 %v311
      %v405 = vunpack.c.h.b16 %v311
      %v406 = vunpack.c.l.b16 %v312
      %v407 = vunpack.c.h.b16 %v312
      %v408 = vunpack.c.l.b16 %v313
      %v409 = vunpack.c.h.b16 %v313
      %v410 = vunpack.c.l.b16 %v314
      %v411 = vunpack.c.h.b16 %v314
      %v412 = vunpack.c.l.b16 %v315
      %v413 = vunpack.c.h.b16 %v315
      %v414 = vunpack.c.l.b16 %v316
      %v415 = vunpack.c.h.b16 %v316
      %v416 = vunpack.c.l.b16 %v317
      %v417 = vunpack.c.h.b16 %v317
      %v418 = vunpack.c.l.b16 %v318
      %v419 = vunpack.c.h.b16 %v318
      %v420 = vunpack.c.l.b16 %v319
      %v421 = vunpack.c.h.b16 %v319
      %v422 = vunpack.c.l.b16 %v320
      %v423 = vunpack.c.h.b16 %v320
      %v424 = vunpack.c.l.b16 %v321
      %v425 = vunpack.c.h.b16 %v321
      %v426 = vunpack.c.l.b16 %v322
      %v427 = vunpack.c.h.b16 %v322
      %v428 = vunpack.c.l.b16 %v323
      %v429 = vunpack.c.h.b16 %v323
      %v430 = vunpack.c.l.b16 %v324
      %v431 = vunpack.c.h.b16 %v324
      %v432 = vunpack.c.l.b16 %v325
      %v433 = vunpack.c.h.b16 %v325
      %v434 = vunpack.c.l.b16 %v326
      %v435 = vunpack.c.h.b16 %v326
      %v436 = vunpack.c.l.b16 %v327
      %v437 = vunpack.c.h.b16 %v327
      %v438 = vunpack.c.l.b16 %v328
      %v439 = vunpack.c.h.b16 %v328
      %v440 = vunpack.c.l.b16 %v329
      %v441 = vunpack.c.h.b16 %v329
      %v442 = vunpack.c.l.b16 %v330
      %v443 = vunpack.c.h.b16 %v330
      %v444 = vunpack.c.l.b16 %v331
      %v445 = vunpack.c.h.b16 %v331
      %v446 = vunpack.c.l.b16 %v332
      %v447 = vunpack.c.h.b16 %v332
      %v448 = vunpack.c.l.b16 %v333
      %v449 = vunpack.c.h.b16 %v333
      %v450 = vunpack.c.l.b16 %v334
      %v451 = vunpack.c.h.b16 %v334
      %v452 = vunpack.c.l.b16 %v335
      %v453 = vunpack.c.h.b16 %v335
      %v454 = vunpack.c.l.b16 %v336
      %v455 = vunpack.c.h.b16 %v336
      %v456 = vunpack.c.l.b16 %v337
      %v457 = vunpack.c.h.b16 %v337
      %v458 = vpack.c.b16 %v388, %v386
      %v459 = vpack.c.b16 %v389, %v387
      %v460 = vpack.c.b16 %v392, %v390
      %v461 = vpack.c.b16 %v393, %v391
      %v462 = vpack.c.b16 %v396, %v394
      %v463 = vpack.c.b16 %v397, %v395
      %v464 = vpack.c.b16 %v400, %v398
      %v465 = vpack.c.b16 %v401, %v399
      %v466 = vpack.c.b16 %v404, %v402
      %v467 = vpack.c.b16 %v405, %v403
      %v468 = vpack.c.b16 %v408, %v406
      %v469 = vpack.c.b16 %v409, %v407
      %v470 = vpack.c.b16 %v412, %v410
      %v471 = vpack.c.b16 %v413, %v411
      %v472 = vpack.c.b16 %v416, %v414
      %v473 = vpack.c.b16 %v417, %v415
      %v474 = vpack.c.b16 %v420, %v418
      %v475 = vpack.c.b16 %v421, %v419
      %v476 = vpack.c.b16 %v424, %v422
      %v477 = vpack.c.b16 %v425, %v423
      %v478 = vpack.c.b16 %v428, %v426
      %v479 = vpack.c.b16 %v429, %v427
      %v480 = vpack.c.b16 %v432, %v430
      %v481 = vpack.c.b16 %v433, %v431
      %v482 = vpack.c.b16 %v436, %v434
      %v483 = vpack.c.b16 %v437, %v435
      %v484 = vpack.c.b16 %v440, %v438
      %v485 = vpack.c.b16 %v441, %v439
      %v486 = vpack.c.b16 %v444, %v442
      %v487 = vpack.c.b16 %v445, %v443
      %v488 = vpack.c.b16 %v448, %v446
      %v489 = vpack.c.b16 %v449, %v447
      %v490 = vpack.c.b16 %v452, %v450
      %v491 = vpack.c.b16 %v453, %v451
      %v492 = vpack.c.b16 %v456, %v454
      %v493 = vpack.c.b16 %v457, %v455
      %vm530 = vcmask 261120
      %v532 = vsel %vm530, %v298, 0
      %v535 = vsel %vm530, %v301, 0
      %537 = vmatprep.subr.bf16.mxu0 %v459
      %538 = vmatpush1.bf16.msra.mxu0 %v458
      %539 = vmatprep.subr.bf16.mxu0 %v461
      %540 = vmatpush1.bf16.msra.mxu0 %v460
      %541 = vmatprep.subr.bf16.mxu0 %v463
      %542 = vmatpush1.bf16.msra.mxu0 %v462
      %543 = vmatprep.subr.bf16.mxu0 %v465
      %544 = vmatpush1.bf16.msra.mxu0 %v464
      %545 = vmatprep.subr.bf16.mxu0 %v467
      %546 = vmatpush1.bf16.msra.mxu0 %v466
      %547 = vmatprep.subr.bf16.mxu0 %v469
      %548 = vmatpush1.bf16.msra.mxu0 %v468
      %549 = vmatprep.subr.bf16.mxu0 %v471
      %550 = vmatpush1.bf16.msra.mxu0 %v470
      %551 = vmatprep.subr.bf16.mxu0 %v473
      %552 = vmatpush1.bf16.msra.mxu0 %v472
      %553 = vmatprep.subr.bf16.mxu0 %v475
      %554 = vmatpush1.bf16.msra.mxu0 %v474
      %555 = vmatprep.subr.bf16.mxu0 %v477
      %556 = vmatpush1.bf16.msra.mxu0 %v476
      %557 = vmatprep.subr.bf16.mxu0 %v479
      %558 = vmatpush1.bf16.msra.mxu0 %v478
      %559 = vmatprep.subr.bf16.mxu0 %v481
      %560 = vmatpush1.bf16.msra.mxu0 %v480
      %561 = vmatprep.subr.bf16.mxu0 %v483
      %562 = vmatpush1.bf16.msra.mxu0 %v482
      %563 = vmatprep.subr.bf16.mxu0 %v485
      %564 = vmatpush1.bf16.msra.mxu0 %v484
      %565 = vmatprep.subr.bf16.mxu0 %v487
      %566 = vmatpush1.bf16.msra.mxu0 %v486
      %567 = vmatprep.subr.bf16.mxu0 %v489
      %568 = vmatpush1.bf16.msra.mxu0 %v488
      %569 = vmatprep.mubr.bf16.mxu0 %v297
      %570 = vmatmul.mubr.bf16.gmra.mrb[0].mxu0 %v296
      %v571 = vpop.f32.mrb[0].mxu0
      %v572 = vadd.f32 %v343, %v571
      %v573 = vpop.f32.mrb[0].mxu0
      %v574 = vadd.f32 %v347, %v573
      %v575 = vpop.f32.mrb[0].mxu0
      %v576 = vadd.f32 %v343, %v575
      %v577 = vpop.f32.mrb[0].mxu0
      %v578 = vadd.f32 %v347, %v577
      %579 = vmatprep.mubr.bf16.mxu0 %v300
      %580 = vmatmul.mubr.bf16.gmra.mrb[0].mxu0 %v299
      %v581 = vpop.f32.mrb[0].mxu0
      %v582 = vadd.f32 %v343, %v581
      %v583 = vpop.f32.mrb[0].mxu0
      %v584 = vadd.f32 %v347, %v583
      %v585 = vpop.f32.mrb[0].mxu0
      %v586 = vpop.f32.mrb[0].mxu0
      %587 = vdwg.mxu0
      %588 = vmatprep.subr.bf16.mxu0 %v491
      %589 = vmatpush1.bf16.msra.mxu0 %v490
      %590 = vmatprep.subr.bf16.mxu0 %v493
      %591 = vmatpush1.bf16.msra.mxu0 %v492
      %592 = vmatprep.subr.bf16.mxu0 0
      %593 = vmatpush1.bf16.msra.mxu0 0
      %594 = vmatprep.subr.bf16.mxu0 0
      %595 = vmatpush1.bf16.msra.mxu0 0
      %596 = vmatprep.subr.bf16.mxu0 0
      %597 = vmatpush1.bf16.msra.mxu0 0
      %598 = vmatprep.subr.bf16.mxu0 0
      %599 = vmatpush1.bf16.msra.mxu0 0
      %600 = vmatprep.subr.bf16.mxu0 0
      %601 = vmatpush1.bf16.msra.mxu0 0
      %602 = vmatprep.subr.bf16.mxu0 0
      %603 = vmatpush1.bf16.msra.mxu0 0
      %604 = vmatprep.subr.bf16.mxu0 0
      %605 = vmatpush1.bf16.msra.mxu0 0
      %606 = vmatprep.subr.bf16.mxu0 0
      %607 = vmatpush1.bf16.msra.mxu0 0
      %608 = vmatprep.subr.bf16.mxu0 0
      %609 = vmatpush1.bf16.msra.mxu0 0
      %610 = vmatprep.subr.bf16.mxu0 0
      %611 = vmatpush1.bf16.msra.mxu0 0
      %612 = vmatprep.subr.bf16.mxu0 0
      %613 = vmatpush1.bf16.msra.mxu0 0
      %614 = vmatprep.subr.bf16.mxu0 0
      %615 = vmatpush1.bf16.msra.mxu0 0
      %616 = vmatprep.subr.bf16.mxu0 0
      %617 = vmatpush1.bf16.msra.mxu0 0
      %618 = vmatprep.subr.bf16.mxu0 0
      %619 = vmatpush1.bf16.msra.mxu0 0
      %620 = vmatprep.mubr.bf16.mxu0 0
      %621 = vmatmul.mubr.bf16.gmra.mrb[0].mxu0 %v532
      %v622 = vpop.f32.mrb[0].mxu0
      %v623 = vadd.f32 %v572, %v622
      %v624 = vpop.f32.mrb[0].mxu0
      %v625 = vadd.f32 %v574, %v624
      %v626 = vpop.f32.mrb[0].mxu0
      %v627 = vadd.f32 %v576, %v626
      %v628 = vpop.f32.mrb[0].mxu0
      %v629 = vadd.f32 %v578, %v628
      %630 = vmatprep.mubr.bf16.mxu0 0
      %631 = vmatmul.mubr.bf16.gmra.mrb[0].mxu0 %v535
      %v632 = vpop.f32.mrb[0].mxu0
      %v633 = vadd.f32 %v582, %v632
      %v634 = vpop.f32.mrb[0].mxu0
      %v635 = vadd.f32 %v584, %v634
      %v636 = vpop.f32.mrb[0].mxu0
      %v637 = vpop.f32.mrb[0].mxu0
      %638 = vdwg.mxu0
      %v639 = vmax.f32 %v623, 0.0
      %v640 = vmax.f32 %v625, 0.0
      %v641 = vmax.f32 %v627, 0.0
      %v642 = vmax.f32 %v629, 0.0
      %v643 = vmax.f32 %v633, 0.0
      %v644 = vmax.f32 %v635, 0.0
      %v645 = vpack.c.bf16 %v641, %v639
      %v646 = vpack.c.bf16 %v642, %v640
      %v647 = vpack.c.bf16 %v643, %v643
      %v648 = vpack.c.bf16 %v644, %v644
      %v649 = vld [vmem:[%s3] sm:$0xff]
      %v650 = vld [vmem:[%s3 + $0x8] sm:$0xff]
      %v651 = vld [vmem:[%s3 + $0x10] sm:$0xff]
      %v652 = vld [vmem:[%s3 + $0x18] sm:$0xff]
      %v653 = vld [vmem:[%s3 + $0x20] sm:$0xff]
      %v654 = vld [vmem:[%s3 + $0x28] sm:$0xff]
      %v655 = vld [vmem:[%s3 + $0x30] sm:$0xff]
      %v656 = vld [vmem:[%s3 + $0x38] sm:$0xff]
      %v657 = vld [vmem:[%s3 + $0x40] sm:$0xff]
      %v658 = vld [vmem:[%s3 + $0x48] sm:$0xff]
      %v659 = vld [vmem:[%s3 + $0x50] sm:$0xff]
      %v660 = vld [vmem:[%s3 + $0x58] sm:$0xff]
      %v661 = vld [vmem:[%s3 + $0x60] sm:$0xff]
      %v662 = vld [vmem:[%s3 + $0x68] sm:$0xff]
      %v663 = vld [vmem:[%s3 + $0x70] sm:$0xff]
      %v664 = vld [vmem:[%s3 + $0x78] sm:$0xff]
      %v665 = vld [vmem:[%s3 + $0x80] sm:$0xff]
      %v666 = vld [vmem:[%s3 + $0x88] sm:$0xff]
      %v667 = vld [vmem:[%s3 + $0x90] sm:$0xff]
      %v668 = vld [vmem:[%s3 + $0x98] sm:$0xff]
      %v669 = vld [vmem:[%s3 + $0xa0] sm:$0xff]
      %v670 = vld [vmem:[%s3 + $0xa8] sm:$0xff]
      %v671 = vld [vmem:[%s3 + $0xb0] sm:$0xff]
      %v672 = vld [vmem:[%s3 + $0xb8] sm:$0xff]
      %v673 = vld [vmem:[%s4] sm:$0x3]
      %v675 = vlaneseq
      %v676 = vshrl.u32 %v675, 7
      %v677 = vsub.s32 0, %v676
      %v678 = vrot.slane %v673, %v677
      %v679 = vlaneseq
      %v680 = vshrl.u32 %v679, 7
      %v681 = vsub.s32 1, %v680
      %v682 = vrot.slane %v673, %v681
      %v709 = vunpack.c.l.b16 %v649
      %v710 = vunpack.c.h.b16 %v649
      %v711 = vunpack.c.l.b16 %v650
      %v712 = vunpack.c.h.b16 %v650
      %v713 = vunpack.c.l.b16 %v651
      %v714 = vunpack.c.h.b16 %v651
      %v715 = vunpack.c.l.b16 %v652
      %v716 = vunpack.c.h.b16 %v652
      %v717 = vunpack.c.l.b16 %v653
      %v718 = vunpack.c.h.b16 %v653
      %v719 = vunpack.c.l.b16 %v654
      %v720 = vunpack.c.h.b16 %v654
      %v721 = vunpack.c.l.b16 %v655
      %v722 = vunpack.c.h.b16 %v655
      %v723 = vunpack.c.l.b16 %v656
      %v724 = vunpack.c.h.b16 %v656
      %v725 = vunpack.c.l.b16 %v657
      %v726 = vunpack.c.h.b16 %v657
      %v727 = vunpack.c.l.b16 %v658
      %v728 = vunpack.c.h.b16 %v658
      %v729 = vunpack.c.l.b16 %v659
      %v730 = vunpack.c.h.b16 %v659
      %v731 = vunpack.c.l.b16 %v660
      %v732 = vunpack.c.h.b16 %v660
      %v733 = vunpack.c.l.b16 %v661
      %v734 = vunpack.c.h.b16 %v661
      %v735 = vunpack.c.l.b16 %v662
      %v736 = vunpack.c.h.b16 %v662
      %v737 = vunpack.c.l.b16 %v663
      %v738 = vunpack.c.h.b16 %v663
      %v739 = vunpack.c.l.b16 %v664
      %v740 = vunpack.c.h.b16 %v664
      %v741 = vunpack.c.l.b16 %v665
      %v742 = vunpack.c.h.b16 %v665
      %v743 = vunpack.c.l.b16 %v666
      %v744 = vunpack.c.h.b16 %v666
      %v745 = vunpack.c.l.b16 %v667
      %v746 = vunpack.c.h.b16 %v667
      %v747 = vunpack.c.l.b16 %v668
      %v748 = vunpack.c.h.b16 %v668
      %v749 = vunpack.c.l.b16 %v669
      %v750 = vunpack.c.h.b16 %v669
      %v751 = vunpack.c.l.b16 %v670
      %v752 = vunpack.c.h.b16 %v670
      %v753 = vunpack.c.l.b16 %v671
      %v754 = vunpack.c.h.b16 %v671
      %v755 = vunpack.c.l.b16 %v672
      %v756 = vunpack.c.h.b16 %v672
      %v757 = vpack.c.b16 %v711, %v709
      %v758 = vpack.c.b16 %v712, %v710
      %v759 = vpack.c.b16 %v715, %v713
      %v760 = vpack.c.b16 %v716, %v714
      %v761 = vpack.c.b16 %v719, %v717
      %v762 = vpack.c.b16 %v720, %v718
      %v763 = vpack.c.b16 %v723, %v721
      %v764 = vpack.c.b16 %v724, %v722
      %v765 = vpack.c.b16 %v727, %v725
      %v766 = vpack.c.b16 %v728, %v726
      %v767 = vpack.c.b16 %v731, %v729
      %v768 = vpack.c.b16 %v732, %v730
      %v769 = vpack.c.b16 %v735, %v733
      %v770 = vpack.c.b16 %v736, %v734
      %v771 = vpack.c.b16 %v739, %v737
      %v772 = vpack.c.b16 %v740, %v738
      %v773 = vpack.c.b16 %v743, %v741
      %v774 = vpack.c.b16 %v744, %v742
      %v775 = vpack.c.b16 %v747, %v745
      %v776 = vpack.c.b16 %v748, %v746
      %v777 = vpack.c.b16 %v751, %v749
      %v778 = vpack.c.b16 %v752, %v750
      %v779 = vpack.c.b16 %v755, %v753
      %v780 = vpack.c.b16 %v756, %v754
      %vm805 = vcmask 523264
      %v807 = vsel %vm805, %v646, 0
      %v810 = vsel %vm805, %v648, 0
      %812 = vmatprep.subr.bf16.mxu0 %v758
      %813 = vmatpush1.bf16.msra.mxu0 %v757
      %814 = vmatprep.subr.bf16.mxu0 %v760
      %815 = vmatpush1.bf16.msra.mxu0 %v759
      %816 = vmatprep.subr.bf16.mxu0 %v762
      %817 = vmatpush1.bf16.msra.mxu0 %v761
      %818 = vmatprep.subr.bf16.mxu0 %v764
      %819 = vmatpush1.bf16.msra.mxu0 %v763
      %820 = vmatprep.subr.bf16.mxu0 %v766
      %821 = vmatpush1.bf16.msra.mxu0 %v765
      %822 = vmatprep.subr.bf16.mxu0 %v768
      %823 = vmatpush1.bf16.msra.mxu0 %v767
      %824 = vmatprep.subr.bf16.mxu0 %v770
      %825 = vmatpush1.bf16.msra.mxu0 %v769
      %826 = vmatprep.subr.bf16.mxu0 %v772
      %827 = vmatpush1.bf16.msra.mxu0 %v771
      %828 = vmatprep.subr.bf16.mxu0 %v774
      %829 = vmatpush1.bf16.msra.mxu0 %v773
      %830 = vmatprep.subr.bf16.mxu0 %v776
      %831 = vmatpush1.bf16.msra.mxu0 %v775
      %832 = vmatprep.subr.bf16.mxu0 %v778
      %833 = vmatpush1.bf16.msra.mxu0 %v777
      %834 = vmatprep.subr.bf16.mxu0 %v780
      %835 = vmatpush1.bf16.msra.mxu0 %v779
      %836 = vmatprep.subr.bf16.mxu0 0
      %837 = vmatpush1.bf16.msra.mxu0 0
      %838 = vmatprep.subr.bf16.mxu0 0
      %839 = vmatpush1.bf16.msra.mxu0 0
      %840 = vmatprep.subr.bf16.mxu0 0
      %841 = vmatpush1.bf16.msra.mxu0 0
      %842 = vmatprep.subr.bf16.mxu0 0
      %843 = vmatpush1.bf16.msra.mxu0 0
      %844 = vmatprep.mubr.bf16.mxu0 %v807
      %845 = vmatmul.mubr.bf16.gmra.mrb[0].mxu0 %v645
      %v846 = vpop.f32.mrb[0].mxu0
      %v847 = vadd.f32 %v678, %v846
      %v848 = vpop.f32.mrb[0].mxu0
      %v849 = vadd.f32 %v682, %v848
      %v850 = vpop.f32.mrb[0].mxu0
      %v851 = vadd.f32 %v678, %v850
      %v852 = vpop.f32.mrb[0].mxu0
      %v853 = vadd.f32 %v682, %v852
      %854 = vmatprep.mubr.bf16.mxu0 %v810
      %855 = vmatmul.mubr.bf16.gmra.mrb[0].mxu0 %v647
      %v856 = vpop.f32.mrb[0].mxu0
      %v857 = vadd.f32 %v678, %v856
      %v858 = vpop.f32.mrb[0].mxu0
      %v859 = vadd.f32 %v682, %v858
      %v860 = vpop.f32.mrb[0].mxu0
      %v861 = vpop.f32.mrb[0].mxu0
      %862 = vdwg.mxu0
      %v863 = vmax.f32 %v847, 0.0
      %v864 = vmax.f32 %v849, 0.0
      %v865 = vmax.f32 %v851, 0.0
      %v866 = vmax.f32 %v853, 0.0
      %v867 = vmax.f32 %v857, 0.0
      %v868 = vmax.f32 %v859, 0.0
      %869 = vst [vmem:[#allocation2] sm:$0xff] %v863
      %870 = vst.msk [vmem:[#allocation2 + $0x8] sm:$0xff] %vm805, %v864
      %871 = vst [vmem:[#allocation2 + $0x10] sm:$0xff] %v865
      %872 = vst.msk [vmem:[#allocation2 + $0x18] sm:$0xff] %vm805, %v866
      %873 = vst [vmem:[#allocation2 + $0x20] sm:$0xff] %v867
      %874 = vst.msk [vmem:[#allocation2 + $0x28] sm:$0xff] %vm805, %v868
      %875 = vst [vmem:[#allocation2 + $0x30] sm:$0xff] 0.0
      %876 = vst.msk [vmem:[#allocation2 + $0x38] sm:$0xff] %vm805, 0.0
      %v877 = vld [vmem:[#allocation2] sm:$0xff]
      %v878 = vld [vmem:[#allocation2 + $0x8] sm:$0xff]
      %v879 = vld [vmem:[#allocation2 + $0x10] sm:$0xff]
      %v880 = vld [vmem:[#allocation2 + $0x18] sm:$0xff]
      %v881 = vld [vmem:[#allocation2 + $0x20] sm:$0xff]
      %v882 = vld [vmem:[#allocation2 + $0x28] sm:$0xff]
      %v883 = vpack.c.bf16 %v879, %v877
      %v884 = vpack.c.bf16 %v880, %v878
      %v885 = vpack.c.bf16 %v881, %v881
      %v886 = vpack.c.bf16 %v882, %v882
      %v887 = vld [vmem:[%s5] sm:$0xf]
      %v888 = vld [vmem:[%s5 + $0x4] sm:$0xf]
      %v889 = vld [vmem:[%s5 + $0x8] sm:$0xf]
      %v890 = vld [vmem:[%s5 + $0xc] sm:$0xf]
      %v891 = vld [vmem:[%s5 + $0x10] sm:$0xf]
      %v892 = vld [vmem:[%s5 + $0x14] sm:$0xf]
      %v893 = vld [vmem:[%s5 + $0x18] sm:$0xf]
      %v894 = vld [vmem:[%s5 + $0x1c] sm:$0xf]
      %v895 = vld [vmem:[%s5 + $0x20] sm:$0xf]
      %v896 = vld [vmem:[%s5 + $0x24] sm:$0xf]
      %v897 = vld [vmem:[%s5 + $0x28] sm:$0xf]
      %v898 = vld [vmem:[%s5 + $0x2c] sm:$0xf]
      %v899 = vld [vmem:[%s5 + $0x30] sm:$0xf]
      %v900 = vld [vmem:[%s5 + $0x34] sm:$0xf]
      %v901 = vld [vmem:[%s5 + $0x38] sm:$0xf]
      %v902 = vld [vmem:[%s5 + $0x3c] sm:$0xf]
      %v903 = vld [vmem:[%s5 + $0x40] sm:$0xf]
      %v904 = vld [vmem:[%s5 + $0x44] sm:$0xf]
      %v905 = vld [vmem:[%s5 + $0x48] sm:$0xf]
      %v906 = vld [vmem:[%s5 + $0x4c] sm:$0xf]
      %v907 = vld [vmem:[%s5 + $0x50] sm:$0xf]
      %v908 = vld [vmem:[%s5 + $0x54] sm:$0xf]
      %v909 = vld [vmem:[%s5 + $0x58] sm:$0xf]
      %v910 = vld [vmem:[%s5 + $0x5c] sm:$0xf]
      %v911 = vld [vmem:[#allocation2] sm:$0xfe]
      %v912 = vld [vmem:[#allocation2 + $0x8] sm:$0xfe]
      %v913 = vld [vmem:[#allocation2 + $0x30] sm:$0x1]
      %v914 = vld [vmem:[#allocation2 + $0x38] sm:$0x1]
      %v915 = vpack.c.bf16 %v879, %v911
      %v916 = vpack.c.bf16 %v880, %v912
      %v917 = vpack.c.bf16 %v913, %v881
      %v918 = vpack.c.bf16 %v914, %v882
      %s919 = scalar_lea.vmem %s5, 96
      %v920 = vld [vmem:[%s919] sm:$0xf]
      %v921 = vld [vmem:[%s919 + $0x4] sm:$0xf]
      %v922 = vld [vmem:[%s919 + $0x8] sm:$0xf]
      %v923 = vld [vmem:[%s919 + $0xc] sm:$0xf]
      %v924 = vld [vmem:[%s919 + $0x10] sm:$0xf]
      %v925 = vld [vmem:[%s919 + $0x14] sm:$0xf]
      %v926 = vld [vmem:[%s919 + $0x18] sm:$0xf]
      %v927 = vld [vmem:[%s919 + $0x1c] sm:$0xf]
      %v928 = vld [vmem:[%s919 + $0x20] sm:$0xf]
      %v929 = vld [vmem:[%s919 + $0x24] sm:$0xf]
      %v930 = vld [vmem:[%s919 + $0x28] sm:$0xf]
      %v931 = vld [vmem:[%s919 + $0x2c] sm:$0xf]
      %v932 = vld [vmem:[%s919 + $0x30] sm:$0xf]
      %v933 = vld [vmem:[%s919 + $0x34] sm:$0xf]
      %v934 = vld [vmem:[%s919 + $0x38] sm:$0xf]
      %v935 = vld [vmem:[%s919 + $0x3c] sm:$0xf]
      %v936 = vld [vmem:[%s919 + $0x40] sm:$0xf]
      %v937 = vld [vmem:[%s919 + $0x44] sm:$0xf]
      %v938 = vld [vmem:[%s919 + $0x48] sm:$0xf]
      %v939 = vld [vmem:[%s919 + $0x4c] sm:$0xf]
      %v940 = vld [vmem:[%s919 + $0x50] sm:$0xf]
      %v941 = vld [vmem:[%s919 + $0x54] sm:$0xf]
      %v942 = vld [vmem:[%s919 + $0x58] sm:$0xf]
      %v943 = vld [vmem:[%s919 + $0x5c] sm:$0xf]
      %vm944 = vsmask.f32 7424
      %v946 = vshrl.u32 %v915, 16
      %v948 = vshll.u32 %v915, 16
      %v950 = vrot.slane %v948, 1
      %v951 = vor.u32 %v946, %v950
      %v953 = vshll.u32 %v917, 16
      %v955 = vrot.slane %v953, 1
      %v956 = vsel %vm944, %v951, %v955
      %v958 = vshrl.u32 %v916, 16
      %v960 = vshll.u32 %v916, 16
      %v962 = vrot.slane %v960, 1
      %v963 = vor.u32 %v958, %v962
      %v965 = vshll.u32 %v918, 16
      %v967 = vrot.slane %v965, 1
      %v968 = vsel %vm944, %v963, %v967
      %v969 = vshrl.u32 %v917, 16
      %v971 = vor.u32 %v969, %v955
      %v972 = vshrl.u32 %v918, 16
      %v974 = vor.u32 %v972, %v967
      %v1001 = vunpack.c.l.b16 %v920
      %v1002 = vunpack.c.l.b16 %v921
      %v1003 = vunpack.c.l.b16 %v922
      %v1004 = vunpack.c.l.b16 %v923
      %v1005 = vunpack.c.l.b16 %v924
      %v1006 = vunpack.c.l.b16 %v925
      %v1007 = vunpack.c.l.b16 %v926
      %v1008 = vunpack.c.l.b16 %v927
      %v1009 = vunpack.c.l.b16 %v928
      %v1010 = vunpack.c.l.b16 %v929
      %v1011 = vunpack.c.l.b16 %v930
      %v1012 = vunpack.c.l.b16 %v931
      %v1013 = vunpack.c.l.b16 %v932
      %v1014 = vunpack.c.l.b16 %v933
      %v1015 = vunpack.c.l.b16 %v934
      %v1016 = vunpack.c.l.b16 %v935
      %v1017 = vunpack.c.l.b16 %v936
      %v1018 = vunpack.c.l.b16 %v937
      %v1019 = vunpack.c.l.b16 %v938
      %v1020 = vunpack.c.l.b16 %v939
      %v1021 = vunpack.c.l.b16 %v940
      %v1022 = vunpack.c.l.b16 %v941
      %v1023 = vunpack.c.l.b16 %v942
      %v1024 = vunpack.c.l.b16 %v943
      %v1025 = vpack.c.b16 %v1002, %v1001
      %v1026 = vpack.c.b16 %v1004, %v1003
      %v1027 = vpack.c.b16 %v1006, %v1005
      %v1028 = vpack.c.b16 %v1008, %v1007
      %v1029 = vpack.c.b16 %v1010, %v1009
      %v1030 = vpack.c.b16 %v1012, %v1011
      %v1031 = vpack.c.b16 %v1014, %v1013
      %v1032 = vpack.c.b16 %v1016, %v1015
      %v1033 = vpack.c.b16 %v1018, %v1017
      %v1034 = vpack.c.b16 %v1020, %v1019
      %v1035 = vpack.c.b16 %v1022, %v1021
      %v1036 = vpack.c.b16 %v1024, %v1023
      %v1050 = vsel %vm805, %v968, 0
      %v1053 = vsel %vm805, %v974, 0
      %1055 = vmatprep.subr.bf16.mxu0 0
      %1056 = vmatpush1.bf16.msra.mxu0 %v1025
      %1057 = vmatprep.subr.bf16.mxu0 0
      %1058 = vmatpush1.bf16.msra.mxu0 %v1026
      %1059 = vmatprep.subr.bf16.mxu0 0
      %1060 = vmatpush1.bf16.msra.mxu0 %v1027
      %1061 = vmatprep.subr.bf16.mxu0 0
      %1062 = vmatpush1.bf16.msra.mxu0 %v1028
      %1063 = vmatprep.subr.bf16.mxu0 0
      %1064 = vmatpush1.bf16.msra.mxu0 %v1029
      %1065 = vmatprep.subr.bf16.mxu0 0
      %1066 = vmatpush1.bf16.msra.mxu0 %v1030
      %1067 = vmatprep.subr.bf16.mxu0 0
      %1068 = vmatpush1.bf16.msra.mxu0 %v1031
      %1069 = vmatprep.subr.bf16.mxu0 0
      %1070 = vmatpush1.bf16.msra.mxu0 %v1032
      %1071 = vmatprep.subr.bf16.mxu0 0
      %1072 = vmatpush1.bf16.msra.mxu0 %v1033
      %1073 = vmatprep.subr.bf16.mxu0 0
      %1074 = vmatpush1.bf16.msra.mxu0 %v1034
      %1075 = vmatprep.subr.bf16.mxu0 0
      %1076 = vmatpush1.bf16.msra.mxu0 %v1035
      %1077 = vmatprep.subr.bf16.mxu0 0
      %1078 = vmatpush1.bf16.msra.mxu0 %v1036
      %1079 = vmatprep.subr.bf16.mxu0 0
      %1080 = vmatpush1.bf16.msra.mxu0 0
      %1081 = vmatprep.subr.bf16.mxu0 0
      %1082 = vmatpush1.bf16.msra.mxu0 0
      %1083 = vmatprep.subr.bf16.mxu0 0
      %1084 = vmatpush1.bf16.msra.mxu0 0
      %1085 = vmatprep.subr.bf16.mxu0 0
      %1086 = vmatpush1.bf16.msra.mxu0 0
      %1087 = vmatprep.mubr.bf16.mxu0 %v1050
      %1088 = vmatmul.mubr.bf16.gmra.mrb[0].mxu0 %v956
      %v1089 = vpop.f32.mrb[0].mxu0
      %v1090 = vadd.f32 0.0, %v1089
      %v1091 = vpop.f32.mrb[0].mxu0
      %v1092 = vpop.f32.mrb[0].mxu0
      %v1093 = vadd.f32 0.0, %v1092
      %v1094 = vpop.f32.mrb[0].mxu0
      %1095 = vmatprep.mubr.bf16.mxu0 %v1053
      %1096 = vmatmul.mubr.bf16.gmra.mrb[0].mxu0 %v971
      %v1097 = vpop.f32.mrb[0].mxu0
      %v1098 = vadd.f32 0.0, %v1097
      %v1099 = vpop.f32.mrb[0].mxu0
      %v1100 = vpop.f32.mrb[0].mxu0
      %v1101 = vpop.f32.mrb[0].mxu0
      %1102 = vdwg.mxu0
      %v1127 = vunpack.c.l.b16 %v887
      %v1128 = vunpack.c.l.b16 %v888
      %v1129 = vunpack.c.l.b16 %v889
      %v1130 = vunpack.c.l.b16 %v890
      %v1131 = vunpack.c.l.b16 %v891
      %v1132 = vunpack.c.l.b16 %v892
      %v1133 = vunpack.c.l.b16 %v893
      %v1134 = vunpack.c.l.b16 %v894
      %v1135 = vunpack.c.l.b16 %v895
      %v1136 = vunpack.c.l.b16 %v896
      %v1137 = vunpack.c.l.b16 %v897
      %v1138 = vunpack.c.l.b16 %v898
      %v1139 = vunpack.c.l.b16 %v899
      %v1140 = vunpack.c.l.b16 %v900
      %v1141 = vunpack.c.l.b16 %v901
      %v1142 = vunpack.c.l.b16 %v902
      %v1143 = vunpack.c.l.b16 %v903
      %v1144 = vunpack.c.l.b16 %v904
      %v1145 = vunpack.c.l.b16 %v905
      %v1146 = vunpack.c.l.b16 %v906
      %v1147 = vunpack.c.l.b16 %v907
      %v1148 = vunpack.c.l.b16 %v908
      %v1149 = vunpack.c.l.b16 %v909
      %v1150 = vunpack.c.l.b16 %v910
      %v1151 = vpack.c.b16 %v1128, %v1127
      %v1152 = vpack.c.b16 %v1130, %v1129
      %v1153 = vpack.c.b16 %v1132, %v1131
      %v1154 = vpack.c.b16 %v1134, %v1133
      %v1155 = vpack.c.b16 %v1136, %v1135
      %v1156 = vpack.c.b16 %v1138, %v1137
      %v1157 = vpack.c.b16 %v1140, %v1139
      %v1158 = vpack.c.b16 %v1142, %v1141
      %v1159 = vpack.c.b16 %v1144, %v1143
      %v1160 = vpack.c.b16 %v1146, %v1145
      %v1161 = vpack.c.b16 %v1148, %v1147
      %v1162 = vpack.c.b16 %v1150, %v1149
      %v1176 = vsel %vm805, %v884, 0
      %v1179 = vsel %vm805, %v886, 0
      %1181 = vmatprep.subr.bf16.mxu0 0
      %1182 = vmatpush1.bf16.msra.mxu0 %v1151
      %1183 = vmatprep.subr.bf16.mxu0 0
      %1184 = vmatpush1.bf16.msra.mxu0 %v1152
      %1185 = vmatprep.subr.bf16.mxu0 0
      %1186 = vmatpush1.bf16.msra.mxu0 %v1153
      %1187 = vmatprep.subr.bf16.mxu0 0
      %1188 = vmatpush1.bf16.msra.mxu0 %v1154
      %1189 = vmatprep.subr.bf16.mxu0 0
      %1190 = vmatpush1.bf16.msra.mxu0 %v1155
      %1191 = vmatprep.subr.bf16.mxu0 0
      %1192 = vmatpush1.bf16.msra.mxu0 %v1156
      %1193 = vmatprep.subr.bf16.mxu0 0
      %1194 = vmatpush1.bf16.msra.mxu0 %v1157
      %1195 = vmatprep.subr.bf16.mxu0 0
      %1196 = vmatpush1.bf16.msra.mxu0 %v1158
      %1197 = vmatprep.subr.bf16.mxu0 0
      %1198 = vmatpush1.bf16.msra.mxu0 %v1159
      %1199 = vmatprep.subr.bf16.mxu0 0
      %1200 = vmatpush1.bf16.msra.mxu0 %v1160
      %1201 = vmatprep.subr.bf16.mxu0 0
      %1202 = vmatpush1.bf16.msra.mxu0 %v1161
      %1203 = vmatprep.subr.bf16.mxu0 0
      %1204 = vmatpush1.bf16.msra.mxu0 %v1162
      %1205 = vmatprep.subr.bf16.mxu0 0
      %1206 = vmatpush1.bf16.msra.mxu0 0
      %1207 = vmatprep.subr.bf16.mxu0 0
      %1208 = vmatpush1.bf16.msra.mxu0 0
      %1209 = vmatprep.subr.bf16.mxu0 0
      %1210 = vmatpush1.bf16.msra.mxu0 0
      %1211 = vmatprep.subr.bf16.mxu0 0
      %1212 = vmatpush1.bf16.msra.mxu0 0
      %1213 = vmatprep.mubr.bf16.mxu0 %v1176
      %1214 = vmatmul.mubr.bf16.gmra.mrb[0].mxu0 %v883
      %v1215 = vpop.f32.mrb[0].mxu0
      %v1216 = vadd.f32 %v1090, %v1215
      %v1217 = vpop.f32.mrb[0].mxu0
      %v1218 = vpop.f32.mrb[0].mxu0
      %v1219 = vadd.f32 %v1093, %v1218
      %v1220 = vpop.f32.mrb[0].mxu0
      %1221 = vmatprep.mubr.bf16.mxu0 %v1179
      %1222 = vmatmul.mubr.bf16.gmra.mrb[0].mxu0 %v885
      %v1223 = vpop.f32.mrb[0].mxu0
      %v1224 = vadd.f32 %v1098, %v1223
      %v1225 = vpop.f32.mrb[0].mxu0
      %v1226 = vpop.f32.mrb[0].mxu0
      %v1227 = vpop.f32.mrb[0].mxu0
      %1228 = vdwg.mxu0
      %v1229 = vld [vmem:[#allocation2] sm:$0xfc]
      %v1230 = vld [vmem:[#allocation2 + $0x8] sm:$0xfc]
      %v1231 = vld [vmem:[#allocation2 + $0x30] sm:$0x3]
      %v1232 = vld [vmem:[#allocation2 + $0x38] sm:$0x3]
      %v1233 = vpack.c.bf16 %v879, %v1229
      %v1234 = vpack.c.bf16 %v880, %v1230
      %v1235 = vpack.c.bf16 %v1231, %v881
      %v1236 = vpack.c.bf16 %v1232, %v882
      %s1237 = scalar_lea.vmem %s5, 192
      %v1238 = vld [vmem:[%s1237] sm:$0xf]
      %v1239 = vld [vmem:[%s1237 + $0x4] sm:$0xf]
      %v1240 = vld [vmem:[%s1237 + $0x8] sm:$0xf]
      %v1241 = vld [vmem:[%s1237 + $0xc] sm:$0xf]
      %v1242 = vld [vmem:[%s1237 + $0x10] sm:$0xf]
      %v1243 = vld [vmem:[%s1237 + $0x14] sm:$0xf]
      %v1244 = vld [vmem:[%s1237 + $0x18] sm:$0xf]
      %v1245 = vld [vmem:[%s1237 + $0x1c] sm:$0xf]
      %v1246 = vld [vmem:[%s1237 + $0x20] sm:$0xf]
      %v1247 = vld [vmem:[%s1237 + $0x24] sm:$0xf]
      %v1248 = vld [vmem:[%s1237 + $0x28] sm:$0xf]
      %v1249 = vld [vmem:[%s1237 + $0x2c] sm:$0xf]
      %v1250 = vld [vmem:[%s1237 + $0x30] sm:$0xf]
      %v1251 = vld [vmem:[%s1237 + $0x34] sm:$0xf]
      %v1252 = vld [vmem:[%s1237 + $0x38] sm:$0xf]
      %v1253 = vld [vmem:[%s1237 + $0x3c] sm:$0xf]
      %v1254 = vld [vmem:[%s1237 + $0x40] sm:$0xf]
      %v1255 = vld [vmem:[%s1237 + $0x44] sm:$0xf]
      %v1256 = vld [vmem:[%s1237 + $0x48] sm:$0xf]
      %v1257 = vld [vmem:[%s1237 + $0x4c] sm:$0xf]
      %v1258 = vld [vmem:[%s1237 + $0x50] sm:$0xf]
      %v1259 = vld [vmem:[%s1237 + $0x54] sm:$0xf]
      %v1260 = vld [vmem:[%s1237 + $0x58] sm:$0xf]
      %v1261 = vld [vmem:[%s1237 + $0x5c] sm:$0xf]
      %vm1266 = vcmask 1046528
      %v1267 = vrot.slane %v1233, 1
      %v1268 = vrot.slane %v1235, 1
      %v1269 = vsel %vm1266, %v1267, %v1268
      %v1270 = vrot.slane %v1234, 1
      %v1271 = vrot.slane %v1236, 1
      %v1272 = vsel %vm1266, %v1270, %v1271
      %v1299 = vunpack.c.l.b16 %v1238
      %v1300 = vunpack.c.l.b16 %v1239
      %v1301 = vunpack.c.l.b16 %v1240
      %v1302 = vunpack.c.l.b16 %v1241
      %v1303 = vunpack.c.l.b16 %v1242
      %v1304 = vunpack.c.l.b16 %v1243
      %v1305 = vunpack.c.l.b16 %v1244
      %v1306 = vunpack.c.l.b16 %v1245
      %v1307 = vunpack.c.l.b16 %v1246
      %v1308 = vunpack.c.l.b16 %v1247
      %v1309 = vunpack.c.l.b16 %v1248
      %v1310 = vunpack.c.l.b16 %v1249
      %v1311 = vunpack.c.l.b16 %v1250
      %v1312 = vunpack.c.l.b16 %v1251
      %v1313 = vunpack.c.l.b16 %v1252
      %v1314 = vunpack.c.l.b16 %v1253
      %v1315 = vunpack.c.l.b16 %v1254
      %v1316 = vunpack.c.l.b16 %v1255
      %v1317 = vunpack.c.l.b16 %v1256
      %v1318 = vunpack.c.l.b16 %v1257
      %v1319 = vunpack.c.l.b16 %v1258
      %v1320 = vunpack.c.l.b16 %v1259
      %v1321 = vunpack.c.l.b16 %v1260
      %v1322 = vunpack.c.l.b16 %v1261
      %v1323 = vpack.c.b16 %v1300, %v1299
      %v1324 = vpack.c.b16 %v1302, %v1301
      %v1325 = vpack.c.b16 %v1304, %v1303
      %v1326 = vpack.c.b16 %v1306, %v1305
      %v1327 = vpack.c.b16 %v1308, %v1307
      %v1328 = vpack.c.b16 %v1310, %v1309
      %v1329 = vpack.c.b16 %v1312, %v1311
      %v1330 = vpack.c.b16 %v1314, %v1313
      %v1331 = vpack.c.b16 %v1316, %v1315
      %v1332 = vpack.c.b16 %v1318, %v1317
      %v1333 = vpack.c.b16 %v1320, %v1319
      %v1334 = vpack.c.b16 %v1322, %v1321
      %v1348 = vsel %vm805, %v1272, 0
      %v1351 = vsel %vm805, %v1271, 0
      %1353 = vmatprep.subr.bf16.mxu0 0
      %1354 = vmatpush1.bf16.msra.mxu0 %v1323
      %1355 = vmatprep.subr.bf16.mxu0 0
      %1356 = vmatpush1.bf16.msra.mxu0 %v1324
      %1357 = vmatprep.subr.bf16.mxu0 0
      %1358 = vmatpush1.bf16.msra.mxu0 %v1325
      %1359 = vmatprep.subr.bf16.mxu0 0
      %1360 = vmatpush1.bf16.msra.mxu0 %v1326
      %1361 = vmatprep.subr.bf16.mxu0 0
      %1362 = vmatpush1.bf16.msra.mxu0 %v1327
      %1363 = vmatprep.subr.bf16.mxu0 0
      %1364 = vmatpush1.bf16.msra.mxu0 %v1328
      %1365 = vmatprep.subr.bf16.mxu0 0
      %1366 = vmatpush1.bf16.msra.mxu0 %v1329
      %1367 = vmatprep.subr.bf16.mxu0 0
      %1368 = vmatpush1.bf16.msra.mxu0 %v1330
      %1369 = vmatprep.subr.bf16.mxu0 0
      %1370 = vmatpush1.bf16.msra.mxu0 %v1331
      %1371 = vmatprep.subr.bf16.mxu0 0
      %1372 = vmatpush1.bf16.msra.mxu0 %v1332
      %1373 = vmatprep.subr.bf16.mxu0 0
      %1374 = vmatpush1.bf16.msra.mxu0 %v1333
      %1375 = vmatprep.subr.bf16.mxu0 0
      %1376 = vmatpush1.bf16.msra.mxu0 %v1334
      %1377 = vmatprep.subr.bf16.mxu0 0
      %1378 = vmatpush1.bf16.msra.mxu0 0
      %1379 = vmatprep.subr.bf16.mxu0 0
      %1380 = vmatpush1.bf16.msra.mxu0 0
      %1381 = vmatprep.subr.bf16.mxu0 0
      %1382 = vmatpush1.bf16.msra.mxu0 0
      %1383 = vmatprep.subr.bf16.mxu0 0
      %1384 = vmatpush1.bf16.msra.mxu0 0
      %1385 = vmatprep.mubr.bf16.mxu0 %v1348
      %1386 = vmatmul.mubr.bf16.gmra.mrb[0].mxu0 %v1269
      %v1387 = vpop.f32.mrb[0].mxu0
      %v1388 = vadd.f32 0.0, %v1387
      %v1389 = vpop.f32.mrb[0].mxu0
      %v1390 = vpop.f32.mrb[0].mxu0
      %v1391 = vadd.f32 0.0, %v1390
      %v1392 = vpop.f32.mrb[0].mxu0
      %1393 = vmatprep.mubr.bf16.mxu0 %v1351
      %1394 = vmatmul.mubr.bf16.gmra.mrb[0].mxu0 %v1268
      %v1395 = vpop.f32.mrb[0].mxu0
      %v1396 = vadd.f32 0.0, %v1395
      %v1397 = vpop.f32.mrb[0].mxu0
      %v1398 = vpop.f32.mrb[0].mxu0
      %v1399 = vpop.f32.mrb[0].mxu0
      %1400 = vdwg.mxu0
      %v1401 = vadd.f32 %v1216, %v1388
      %v1402 = vadd.f32 %v1219, %v1391
      %v1403 = vadd.f32 %v1224, %v1396
      %v1404 = vld [vmem:[#allocation2] sm:$0xf8]
      %v1405 = vld [vmem:[#allocation2 + $0x8] sm:$0xf8]
      %v1406 = vld [vmem:[#allocation2 + $0x30] sm:$0x7]
      %v1407 = vld [vmem:[#allocation2 + $0x38] sm:$0x7]
      %v1408 = vpack.c.bf16 %v879, %v1404
      %v1409 = vpack.c.bf16 %v880, %v1405
      %v1410 = vpack.c.bf16 %v1406, %v881
      %v1411 = vpack.c.bf16 %v1407, %v882
      %s1412 = scalar_lea.vmem %s5, 288
      %v1413 = vld [vmem:[%s1412] sm:$0xf]
      %v1414 = vld [vmem:[%s1412 + $0x4] sm:$0xf]
      %v1415 = vld [vmem:[%s1412 + $0x8] sm:$0xf]
      %v1416 = vld [vmem:[%s1412 + $0xc] sm:$0xf]
      %v1417 = vld [vmem:[%s1412 + $0x10] sm:$0xf]
      %v1418 = vld [vmem:[%s1412 + $0x14] sm:$0xf]
      %v1419 = vld [vmem:[%s1412 + $0x18] sm:$0xf]
      %v1420 = vld [vmem:[%s1412 + $0x1c] sm:$0xf]
      %v1421 = vld [vmem:[%s1412 + $0x20] sm:$0xf]
      %v1422 = vld [vmem:[%s1412 + $0x24] sm:$0xf]
      %v1423 = vld [vmem:[%s1412 + $0x28] sm:$0xf]
      %v1424 = vld [vmem:[%s1412 + $0x2c] sm:$0xf]
      %v1425 = vld [vmem:[%s1412 + $0x30] sm:$0xf]
      %v1426 = vld [vmem:[%s1412 + $0x34] sm:$0xf]
      %v1427 = vld [vmem:[%s1412 + $0x38] sm:$0xf]
      %v1428 = vld [vmem:[%s1412 + $0x3c] sm:$0xf]
      %v1429 = vld [vmem:[%s1412 + $0x40] sm:$0xf]
      %v1430 = vld [vmem:[%s1412 + $0x44] sm:$0xf]
      %v1431 = vld [vmem:[%s1412 + $0x48] sm:$0xf]
      %v1432 = vld [vmem:[%s1412 + $0x4c] sm:$0xf]
      %v1433 = vld [vmem:[%s1412 + $0x50] sm:$0xf]
      %v1434 = vld [vmem:[%s1412 + $0x54] sm:$0xf]
      %v1435 = vld [vmem:[%s1412 + $0x58] sm:$0xf]
      %v1436 = vld [vmem:[%s1412 + $0x5c] sm:$0xf]
      %vm1437 = vsmask.f32 6400
      %v1439 = vshrl.u32 %v1408, 16
      %v1441 = vrot.slane %v1439, 1
      %v1442 = vshll.u32 %v1408, 16
      %v1444 = vrot.slane %v1442, 2
      %v1445 = vor.u32 %v1441, %v1444
      %v1447 = vshrl.u32 %v1410, 16
      %v1449 = vrot.slane %v1447, 1
      %v1450 = vshll.u32 %v1410, 16
      %v1452 = vrot.slane %v1450, 2
      %v1453 = vor.u32 %v1449, %v1452
      %v1454 = vsel %vm1437, %v1445, %v1453
      %v1456 = vshrl.u32 %v1409, 16
      %v1458 = vrot.slane %v1456, 1
      %v1459 = vshll.u32 %v1409, 16
      %v1461 = vrot.slane %v1459, 2
      %v1462 = vor.u32 %v1458, %v1461
      %v1464 = vshrl.u32 %v1411, 16
      %v1466 = vrot.slane %v1464, 1
      %v1467 = vshll.u32 %v1411, 16
      %v1469 = vrot.slane %v1467, 2
      %v1470 = vor.u32 %v1466, %v1469
      %v1471 = vsel %vm1437, %v1462, %v1470
      %v1498 = vunpack.c.l.b16 %v1413
      %v1499 = vunpack.c.l.b16 %v1414
      %v1500 = vunpack.c.l.b16 %v1415
      %v1501 = vunpack.c.l.b16 %v1416
      %v1502 = vunpack.c.l.b16 %v1417
      %v1503 = vunpack.c.l.b16 %v1418
      %v1504 = vunpack.c.l.b16 %v1419
      %v1505 = vunpack.c.l.b16 %v1420
      %v1506 = vunpack.c.l.b16 %v1421
      %v1507 = vunpack.c.l.b16 %v1422
      %v1508 = vunpack.c.l.b16 %v1423
      %v1509 = vunpack.c.l.b16 %v1424
      %v1510 = vunpack.c.l.b16 %v1425
      %v1511 = vunpack.c.l.b16 %v1426
      %v1512 = vunpack.c.l.b16 %v1427
      %v1513 = vunpack.c.l.b16 %v1428
      %v1514 = vunpack.c.l.b16 %v1429
      %v1515 = vunpack.c.l.b16 %v1430
      %v1516 = vunpack.c.l.b16 %v1431
      %v1517 = vunpack.c.l.b16 %v1432
      %v1518 = vunpack.c.l.b16 %v1433
      %v1519 = vunpack.c.l.b16 %v1434
      %v1520 = vunpack.c.l.b16 %v1435
      %v1521 = vunpack.c.l.b16 %v1436
      %v1522 = vpack.c.b16 %v1499, %v1498
      %v1523 = vpack.c.b16 %v1501, %v1500
      %v1524 = vpack.c.b16 %v1503, %v1502
      %v1525 = vpack.c.b16 %v1505, %v1504
      %v1526 = vpack.c.b16 %v1507, %v1506
      %v1527 = vpack.c.b16 %v1509, %v1508
      %v1528 = vpack.c.b16 %v1511, %v1510
      %v1529 = vpack.c.b16 %v1513, %v1512
      %v1530 = vpack.c.b16 %v1515, %v1514
      %v1531 = vpack.c.b16 %v1517, %v1516
      %v1532 = vpack.c.b16 %v1519, %v1518
      %v1533 = vpack.c.b16 %v1521, %v1520
      %v1547 = vsel %vm805, %v1471, 0
      %v1550 = vsel %vm805, %v1470, 0
      %1552 = vmatprep.subr.bf16.mxu0 0
      %1553 = vmatpush1.bf16.msra.mxu0 %v1522
      %1554 = vmatprep.subr.bf16.mxu0 0
      %1555 = vmatpush1.bf16.msra.mxu0 %v1523
      %1556 = vmatprep.subr.bf16.mxu0 0
      %1557 = vmatpush1.bf16.msra.mxu0 %v1524
      %1558 = vmatprep.subr.bf16.mxu0 0
      %1559 = vmatpush1.bf16.msra.mxu0 %v1525
      %1560 = vmatprep.subr.bf16.mxu0 0
      %1561 = vmatpush1.bf16.msra.mxu0 %v1526
      %1562 = vmatprep.subr.bf16.mxu0 0
      %1563 = vmatpush1.bf16.msra.mxu0 %v1527
      %1564 = vmatprep.subr.bf16.mxu0 0
      %1565 = vmatpush1.bf16.msra.mxu0 %v1528
      %1566 = vmatprep.subr.bf16.mxu0 0
      %1567 = vmatpush1.bf16.msra.mxu0 %v1529
      %1568 = vmatprep.subr.bf16.mxu0 0
      %1569 = vmatpush1.bf16.msra.mxu0 %v1530
      %1570 = vmatprep.subr.bf16.mxu0 0
      %1571 = vmatpush1.bf16.msra.mxu0 %v1531
      %1572 = vmatprep.subr.bf16.mxu0 0
      %1573 = vmatpush1.bf16.msra.mxu0 %v1532
      %1574 = vmatprep.subr.bf16.mxu0 0
      %1575 = vmatpush1.bf16.msra.mxu0 %v1533
      %1576 = vmatprep.subr.bf16.mxu0 0
      %1577 = vmatpush1.bf16.msra.mxu0 0
      %1578 = vmatprep.subr.bf16.mxu0 0
      %1579 = vmatpush1.bf16.msra.mxu0 0
      %1580 = vmatprep.subr.bf16.mxu0 0
      %1581 = vmatpush1.bf16.msra.mxu0 0
      %1582 = vmatprep.subr.bf16.mxu0 0
      %1583 = vmatpush1.bf16.msra.mxu0 0
      %1584 = vmatprep.mubr.bf16.mxu0 %v1547
      %1585 = vmatmul.mubr.bf16.gmra.mrb[0].mxu0 %v1454
      %v1586 = vpop.f32.mrb[0].mxu0
      %v1587 = vadd.f32 0.0, %v1586
      %v1588 = vpop.f32.mrb[0].mxu0
      %v1589 = vpop.f32.mrb[0].mxu0
      %v1590 = vadd.f32 0.0, %v1589
      %v1591 = vpop.f32.mrb[0].mxu0
      %1592 = vmatprep.mubr.bf16.mxu0 %v1550
      %1593 = vmatmul.mubr.bf16.gmra.mrb[0].mxu0 %v1453
      %v1594 = vpop.f32.mrb[0].mxu0
      %v1595 = vadd.f32 0.0, %v1594
      %v1596 = vpop.f32.mrb[0].mxu0
      %v1597 = vpop.f32.mrb[0].mxu0
      %v1598 = vpop.f32.mrb[0].mxu0
      %1599 = vdwg.mxu0
      %v1600 = vadd.f32 %v1401, %v1587
      %v1601 = vadd.f32 %v1402, %v1590
      %v1602 = vadd.f32 %v1403, %v1595
      %v1603 = vld [vmem:[#allocation2] sm:$0xf0]
      %v1604 = vld [vmem:[#allocation2 + $0x8] sm:$0xf0]
      %v1605 = vld [vmem:[#allocation2 + $0x30] sm:$0xf]
      %v1606 = vld [vmem:[#allocation2 + $0x38] sm:$0xf]
      %v1607 = vpack.c.bf16 %v879, %v1603
      %v1608 = vpack.c.bf16 %v880, %v1604
      %v1609 = vpack.c.bf16 %v1605, %v881
      %v1610 = vpack.c.bf16 %v1606, %v882
      %s1611 = scalar_lea.vmem %s5, 384
      %v1612 = vld [vmem:[%s1611] sm:$0xf]
      %v1613 = vld [vmem:[%s1611 + $0x4] sm:$0xf]
      %v1614 = vld [vmem:[%s1611 + $0x8] sm:$0xf]
      %v1615 = vld [vmem:[%s1611 + $0xc] sm:$0xf]
      %v1616 = vld [vmem:[%s1611 + $0x10] sm:$0xf]
      %v1617 = vld [vmem:[%s1611 + $0x14] sm:$0xf]
      %v1618 = vld [vmem:[%s1611 + $0x18] sm:$0xf]
      %v1619 = vld [vmem:[%s1611 + $0x1c] sm:$0xf]
      %v1620 = vld [vmem:[%s1611 + $0x20] sm:$0xf]
      %v1621 = vld [vmem:[%s1611 + $0x24] sm:$0xf]
      %v1622 = vld [vmem:[%s1611 + $0x28] sm:$0xf]
      %v1623 = vld [vmem:[%s1611 + $0x2c] sm:$0xf]
      %v1624 = vld [vmem:[%s1611 + $0x30] sm:$0xf]
      %v1625 = vld [vmem:[%s1611 + $0x34] sm:$0xf]
      %v1626 = vld [vmem:[%s1611 + $0x38] sm:$0xf]
      %v1627 = vld [vmem:[%s1611 + $0x3c] sm:$0xf]
      %v1628 = vld [vmem:[%s1611 + $0x40] sm:$0xf]
      %v1629 = vld [vmem:[%s1611 + $0x44] sm:$0xf]
      %v1630 = vld [vmem:[%s1611 + $0x48] sm:$0xf]
      %v1631 = vld [vmem:[%s1611 + $0x4c] sm:$0xf]
      %v1632 = vld [vmem:[%s1611 + $0x50] sm:$0xf]
      %v1633 = vld [vmem:[%s1611 + $0x54] sm:$0xf]
      %v1634 = vld [vmem:[%s1611 + $0x58] sm:$0xf]
      %v1635 = vld [vmem:[%s1611 + $0x5c] sm:$0xf]
      %vm1640 = vcmask 1045504
      %v1641 = vrot.slane %v1607, 2
      %v1642 = vrot.slane %v1609, 2
      %v1643 = vsel %vm1640, %v1641, %v1642
      %v1644 = vrot.slane %v1608, 2
      %v1645 = vrot.slane %v1610, 2
      %v1646 = vsel %vm1640, %v1644, %v1645
      %v1673 = vunpack.c.l.b16 %v1612
      %v1674 = vunpack.c.l.b16 %v1613
      %v1675 = vunpack.c.l.b16 %v1614
      %v1676 = vunpack.c.l.b16 %v1615
      %v1677 = vunpack.c.l.b16 %v1616
      %v1678 = vunpack.c.l.b16 %v1617
      %v1679 = vunpack.c.l.b16 %v1618
      %v1680 = vunpack.c.l.b16 %v1619
      %v1681 = vunpack.c.l.b16 %v1620
      %v1682 = vunpack.c.l.b16 %v1621
      %v1683 = vunpack.c.l.b16 %v1622
      %v1684 = vunpack.c.l.b16 %v1623
      %v1685 = vunpack.c.l.b16 %v1624
      %v1686 = vunpack.c.l.b16 %v1625
      %v1687 = vunpack.c.l.b16 %v1626
      %v1688 = vunpack.c.l.b16 %v1627
      %v1689 = vunpack.c.l.b16 %v1628
      %v1690 = vunpack.c.l.b16 %v1629
      %v1691 = vunpack.c.l.b16 %v1630
      %v1692 = vunpack.c.l.b16 %v1631
      %v1693 = vunpack.c.l.b16 %v1632
      %v1694 = vunpack.c.l.b16 %v1633
      %v1695 = vunpack.c.l.b16 %v1634
      %v1696 = vunpack.c.l.b16 %v1635
      %v1697 = vpack.c.b16 %v1674, %v1673
      %v1698 = vpack.c.b16 %v1676, %v1675
      %v1699 = vpack.c.b16 %v1678, %v1677
      %v1700 = vpack.c.b16 %v1680, %v1679
      %v1701 = vpack.c.b16 %v1682, %v1681
      %v1702 = vpack.c.b16 %v1684, %v1683
      %v1703 = vpack.c.b16 %v1686, %v1685
      %v1704 = vpack.c.b16 %v1688, %v1687
      %v1705 = vpack.c.b16 %v1690, %v1689
      %v1706 = vpack.c.b16 %v1692, %v1691
      %v1707 = vpack.c.b16 %v1694, %v1693
      %v1708 = vpack.c.b16 %v1696, %v1695
      %v1722 = vsel %vm805, %v1646, 0
      %v1725 = vsel %vm805, %v1645, 0
      %1727 = vmatprep.subr.bf16.mxu0 0
      %1728 = vmatpush1.bf16.msra.mxu0 %v1697
      %1729 = vmatprep.subr.bf16.mxu0 0
      %1730 = vmatpush1.bf16.msra.mxu0 %v1698
      %1731 = vmatprep.subr.bf16.mxu0 0
      %1732 = vmatpush1.bf16.msra.mxu0 %v1699
      %1733 = vmatprep.subr.bf16.mxu0 0
      %1734 = vmatpush1.bf16.msra.mxu0 %v1700
      %1735 = vmatprep.subr.bf16.mxu0 0
      %1736 = vmatpush1.bf16.msra.mxu0 %v1701
      %1737 = vmatprep.subr.bf16.mxu0 0
      %1738 = vmatpush1.bf16.msra.mxu0 %v1702
      %1739 = vmatprep.subr.bf16.mxu0 0
      %1740 = vmatpush1.bf16.msra.mxu0 %v1703
      %1741 = vmatprep.subr.bf16.mxu0 0
      %1742 = vmatpush1.bf16.msra.mxu0 %v1704
      %1743 = vmatprep.subr.bf16.mxu0 0
      %1744 = vmatpush1.bf16.msra.mxu0 %v1705
      %1745 = vmatprep.subr.bf16.mxu0 0
      %1746 = vmatpush1.bf16.msra.mxu0 %v1706
      %1747 = vmatprep.subr.bf16.mxu0 0
      %1748 = vmatpush1.bf16.msra.mxu0 %v1707
      %1749 = vmatprep.subr.bf16.mxu0 0
      %1750 = vmatpush1.bf16.msra.mxu0 %v1708
      %1751 = vmatprep.subr.bf16.mxu0 0
      %1752 = vmatpush1.bf16.msra.mxu0 0
      %1753 = vmatprep.subr.bf16.mxu0 0
      %1754 = vmatpush1.bf16.msra.mxu0 0
      %1755 = vmatprep.subr.bf16.mxu0 0
      %1756 = vmatpush1.bf16.msra.mxu0 0
      %1757 = vmatprep.subr.bf16.mxu0 0
      %1758 = vmatpush1.bf16.msra.mxu0 0
      %1759 = vmatprep.mubr.bf16.mxu0 %v1722
      %1760 = vmatmul.mubr.bf16.gmra.mrb[0].mxu0 %v1643
      %v1761 = vpop.f32.mrb[0].mxu0
      %v1762 = vadd.f32 0.0, %v1761
      %v1763 = vpop.f32.mrb[0].mxu0
      %v1764 = vpop.f32.mrb[0].mxu0
      %v1765 = vadd.f32 0.0, %v1764
      %v1766 = vpop.f32.mrb[0].mxu0
      %1767 = vmatprep.mubr.bf16.mxu0 %v1725
      %1768 = vmatmul.mubr.bf16.gmra.mrb[0].mxu0 %v1642
      %v1769 = vpop.f32.mrb[0].mxu0
      %v1770 = vadd.f32 0.0, %v1769
      %v1771 = vpop.f32.mrb[0].mxu0
      %v1772 = vpop.f32.mrb[0].mxu0
      %v1773 = vpop.f32.mrb[0].mxu0
      %1774 = vdwg.mxu0
      %v1775 = vadd.f32 %v1600, %v1762
      %v1776 = vadd.f32 %v1601, %v1765
      %v1777 = vadd.f32 %v1602, %v1770
      %s1778 = sld [smem:[#allocation3]]
      %v1779 = vstv %s1778
      %v1780 = vadd.f32 %v1775, %v1779
      %v1781 = vadd.f32 %v1776, %v1779
      %v1782 = vadd.f32 %v1777, %v1779
      %v1783 = vmax.f32 %v1780, 0.0
      %v1784 = vmax.f32 %v1781, 0.0
      %v1785 = vmax.f32 %v1782, 0.0
      %1786 = vst [vmem:[%s284] sm:$0xff] %v1783
      %1787 = vst [vmem:[%s284 + $0x8] sm:$0xff] %v1784
      %1788 = vst [vmem:[%s284 + $0x10] sm:$0xff] %v1785
      %s1789 = smul.u32 3, %s19
      %p1790 = scmp.lt.s32.totalorder %s1789, 5
      %s1791 = scalar_select %p1790, %s1789, 5
      %s1792 = smul.addr %s1791, 8
      %s1793 = scalar_lea.vmem %s7, %s1792
      // Predicated region
      $region49: #{_forward_impl.1} parent=47 // pred_check
        %p1794 = pneg %p189
      $region50: #{_forward_impl.1} parent=47 // pred_check_branch
        %1796 = sbr.rel (%p1794) target = $region52
      $region51: #{_forward_impl.1} parent=47 // pred_region
        %s1797 = smul.u32 3, %s19
      $region52: #{_forward_impl.1} parent=47 // pred_fallthru
        _
    $region48: #{_forward_impl.1} parent=5 // pred_fallthru
      _
    %p1798 = scmp.le.s32.totalorder 2, %s14
    // Predicated region
    $region53: #{_forward_impl.1} parent=5 // pred_check
      %p1799 = pneg %p1798
    $region54: #{_forward_impl.1} parent=5 // pred_check_branch
      %1801 = sbr.rel (%p1799) target = $region56
    $region55: #{_forward_impl.1} parent=5 // pred_region
      %s1802 = ssub.s32 %s14, 2
      // Predicated region
      $region57: #{_forward_impl.1} parent=55 // pred_check
        %p1803 = pneg %p195
      $region58: #{_forward_impl.1} parent=55 // pred_check_branch
        %1805 = sbr.rel (%p1803) target = $region60
      $region59: #{_forward_impl.1} parent=55 // pred_region
        %s1806 = smul.u32 3, %s20
        %p1807 = scmp.lt.s32.totalorder %s1806, 5
        %s1808 = scalar_select %p1807, %s1806, 5
        %s1809 = smul.addr %s1808, 8
        %s1810 = scalar_lea.vmem %s7, %s1809
      $region60: #{_forward_impl.1} parent=55 // pred_fallthru
        _
    $region56: #{_forward_impl.1} parent=5 // pred_fallthru
      _
  $region6: #{_forward_impl.1} parent=0 // loop_footer
    %s18 = sadd.s32 1, %s14
  $region7: #{_forward_impl.1} parent=0 // loop_footer_branch
    %13 = sbr.rel target = $region3
  $region8: #{_forward_impl.1} parent=0 // loop_exit
    _

</llo_original>
